<compile_context>
chip_gen: v5e
topology: v5e:2x2
jax: 0.10.0
libtpu: 0.0.40
codegen_flags: <defaults>
</compile_context>

<pallas_src>
import functools

import jax
import jax.numpy as jnp
from jax import lax
from jax.experimental import pallas as pl
from jax.experimental.pallas import tpu as pltpu


def _round_up(x, m):
    return ((x + m - 1) // m) * m


def _channel_mix_kernel(x_ref, bnd_ref, mix_ref, wk_ref, wr_ref, wv_ref,
                        o_ref, *, seq_len, h_block):
    # x_ref  : (rblk, C) bf16   current rows of flattened (B*T, C) (padded)
    # bnd_ref: (1, 1, C) bf16   row immediately preceding this tile's first row
    # mix_ref: (2, C)  f32      [time_mix_k ; time_mix_r]     (VMEM resident)
    # wk_ref : (C, H)  bf16     key.weight^T                  (VMEM resident)
    # wr_ref : (C, C)  bf16     receptance.weight^T           (VMEM resident)
    # wv_ref : (H, C)  bf16     value.weight^T                (VMEM resident)
    rblk, C = x_ref.shape
    H = wk_ref.shape[1]

    x = x_ref[...].astype(jnp.float32)                        # (rblk, C)

    # time_shift == ZeroPad2d((0,0,1,-1)):  xx[t] = x[t-1],  xx[t==0] = 0
    xx = pltpu.roll(x, shift=1, axis=0)                       # XLU sublane roll
    row = lax.broadcasted_iota(jnp.int32, (rblk, 1), 0)
    bnd = bnd_ref[0].astype(jnp.float32)                      # (1, C)
    xx = jnp.where(row == 0, bnd, xx)                         # fix wrap-around row
    g = pl.program_id(0) * rblk + row                         # global flat row id
    xx = jnp.where(g % seq_len == 0, 0.0, xx)                 # t == 0 -> no history

    mix = mix_ref[...]                                        # (2, C) f32
    d = x - xx
    xk = xx + mix[0:1, :] * d                                 # == x*tmk + xx*(1-tmk)
    xr = xx + mix[1:2, :] * d                                 # == x*tmr + xx*(1-tmr)

    # receptance: Linear(C -> C) + sigmoid (MXU + EUP)
    r = jax.nn.sigmoid(
        jnp.dot(xr.astype(jnp.bfloat16), wr_ref[...],
                preferred_element_type=jnp.float32))          # (rblk, C) f32

    # key / value: kv = relu(xk @ Wk)^2 @ Wv, H-chunked to bound the f32 temp
    xk_bf = xk.astype(jnp.bfloat16)
    kv = jnp.zeros((rblk, C), jnp.float32)
    for h0 in range(0, H, h_block):
        h1 = min(h0 + h_block, H)
        k = jnp.dot(xk_bf, wk_ref[:, h0:h1],
                    preferred_element_type=jnp.float32)       # (rblk, hchunk)
        k = jnp.square(jnp.maximum(k, 0.0))
        kv = kv + jnp.dot(k.astype(jnp.bfloat16), wv_ref[h0:h1, :],
                          preferred_element_type=jnp.float32)

    o_ref[...] = (r * kv).astype(o_ref.dtype)


def prepare_channel_mix_params(time_mix_k, time_mix_r,
                               w_key, w_receptance, w_value,
                               *, weight_dtype=jnp.bfloat16):
    """One-time parameter prep (outside the hot path).

    PyTorch Linear layout: w_key (4C, C), w_receptance (C, C), w_value (C, 4C).
    Weights are transposed, padded to multiples of 128 on both dims (lane-dense,
    full MXU width) and cast to bf16 once.
    """
    C = int(w_receptance.shape[0])
    H = int(w_key.shape[0])
    C_pad = _round_up(C, 128)
    H_pad = _round_up(H, 128)

    def prep_t(w, rows, cols):
        wt = jnp.asarray(w, jnp.float32).T
        wt = jnp.pad(wt, ((0, rows - wt.shape[0]), (0, cols - wt.shape[1])))
        return wt.astype(weight_dtype)

    mix = jnp.stack([jnp.asarray(time_mix_k, jnp.float32).reshape(C),
                     jnp.asarray(time_mix_r, jnp.float32).reshape(C)], axis=0)
    mix = jnp.pad(mix, ((0, 0), (0, C_pad - C)))
    return dict(
        mix=mix,                                     # (2, C_pad) f32
        wkT=prep_t(w_key, C_pad, H_pad),             # (C_pad, H_pad) bf16
        wrT=prep_t(w_receptance, C_pad, C_pad),      # (C_pad, C_pad) bf16
        wvT=prep_t(w_value, H_pad, C_pad),           # (H_pad, C_pad) bf16
        n_embd=C, hidden=H,
    )


def rwkv_channel_mix(x, params, *, row_block=256, h_block=512,
                     io_dtype=jnp.bfloat16, out_dtype=None):
    """x: (B, T, C). params: output of prepare_channel_mix_params."""
    B, T, C = x.shape
    assert C == params["n_embd"]
    out_dtype = x.dtype if out_dtype is None else out_dtype
    C_pad = params["wrT"].shape[0]
    H_pad = params["wkT"].shape[1]

    # ---- row tiling over flattened (B*T) rows -------------------------------
    N = B * T
    rblk = max(8, (min(row_block, max(N, 8)) // 8) * 8)       # sublane multiple
    n_pad = (-N) % rblk
    n_padded = N + n_pad
    n_tiles = n_padded // rblk

    xf = jnp.asarray(x).reshape(N, C).astype(io_dtype)
    if C_pad != C:
        xf = jnp.pad(xf, ((0, 0), (0, C_pad - C)))
    if n_pad:
        xf = jnp.pad(xf, ((0, n_pad), (0, 0)))

    # Boundary rows: for tile i, the flattened row just before its first row.
    # Values at sequence starts are zeroed inside the kernel (global_row % T == 0),
    # so no masking is needed here; this is a tiny (n_tiles, C) gather.
    bnd_idx = jnp.maximum(jnp.arange(n_tiles) * rblk - 1, 0)
    bnd = jnp.take(xf, bnd_idx, axis=0)[:, None, :]           # (n_tiles, 1, C_pad)

    hb = min(H_pad, max(128, (h_block // 128) * 128))

    # ---- explicit VMEM budget ----------------------------------------------
    weight_bytes = sum(int(params[k].size) * params[k].dtype.itemsize
                       for k in ("wkT", "wrT", "wvT", "mix"))
    io_bytes = jnp.dtype(io_dtype).itemsize
    out_bytes = jnp.dtype(out_dtype).itemsize
    stream_bytes = 2 * (rblk * C_pad * io_bytes               # x tile (2-buffered)
                        + rblk * C_pad * out_bytes            # out tile
                        + C_pad * io_bytes)                   # boundary row
    scratch_bytes = rblk * (hb + 6 * C_pad) * 4               # in-kernel f32 temps
    vmem_limit = int(min(100 << 20,
                         max(32 << 20,
                             weight_bytes + stream_bytes + scratch_bytes + (4 << 20))))

    # ---- specs ---------------------------------------------------------------
    row_spec = pl.BlockSpec((rblk, C_pad), lambda i: (i, 0))
    # Whole-array VMEM residency for weights / mix: copied in once, no per-step
    # DMA and no double buffering (saves 18*C^2 bytes of scoped VMEM).
    resident = pl.BlockSpec(memory_space=pltpu.MemorySpace.VMEM)

    cost = pl.CostEstimate(
        flops=2 * N * (2 * C_pad * H_pad + C_pad * C_pad),
        transcendentals=N * C_pad,                            # sigmoid
        bytes_accessed=(N * C_pad * (io_bytes + out_bytes) + weight_bytes
                        + n_tiles * C_pad * io_bytes),
    )

    grid_spec = pltpu.PrefetchScalarGridSpec(
        num_scalar_prefetch=0,
        grid=(n_tiles,),
        in_specs=[
            row_spec,                                          # x rows (bf16)
            pl.BlockSpec((1, 1, C_pad), lambda i: (i, 0, 0)),  # boundary rows
            resident,                                          # mix (2, C) f32
            resident,                                          # W_k^T  bf16
            resident,                                          # W_r^T  bf16
            resident,                                          # W_v^T  bf16
        ],
        out_specs=row_spec,
    )

    out = pl.pallas_call(
        functools.partial(_channel_mix_kernel, seq_len=T, h_block=hb),
        out_shape=jax.ShapeDtypeStruct((n_padded, C_pad), out_dtype),
        grid_spec=grid_spec,
        compiler_params=pltpu.CompilerParams(
            dimension_semantics=("parallel",),
            vmem_limit_bytes=vmem_limit),
        cost_estimate=cost,
    )(xf, bnd, params["mix"], params["wkT"], params["wrT"], params["wvT"])

    return out[:N, :C].reshape(B, T, C)


def _reference(x, tmk, tmr, wk, wr, wv):
    B, T, C = x.shape
    xx = jnp.concatenate([jnp.zeros((B, 1, C), x.dtype), x[:, :-1, :]], axis=1)
    tmk = tmk.reshape(1, 1, C)
    tmr = tmr.reshape(1, 1, C)
    xk = x * tmk + xx * (1.0 - tmk)
    xr = x * tmr + xx * (1.0 - tmr)
    k = jnp.square(jnp.maximum(xk @ wk.T, 0.0))
    return jax.nn.sigmoid(xr @ wr.T) * (k @ wv.T)


if __name__ == "__main__":
    # config: n_embd=32, n_layer=4, layer_id=1  ->  hidden_sz = 128
    B, T, C = 2, 128, 32
    H = 4 * C
    layer_id, n_layer = 1, 4
    ratio_1_to_almost0 = 1.0 - layer_id / n_layer

    # time_mix params exactly as in __init__: (i / n_embd) ** ratio
    idx = jnp.arange(C, dtype=jnp.float32) / C
    time_mix_k = jnp.power(idx, ratio_1_to_almost0)
    time_mix_r = jnp.power(idx, ratio_1_to_almost0)

    key = jax.random.PRNGKey(0)
    k1, k2, k3, k4 = jax.random.split(key, 4)
    x = jax.random.normal(k1, (B, T, C), dtype=jnp.float32)
    w_key = jax.random.normal(k2, (H, C), dtype=jnp.float32) * 0.02
    w_receptance = jax.random.normal(k3, (C, C), dtype=jnp.float32) * 0.02
    w_value = jax.random.normal(k4, (C, H), dtype=jnp.float32) * 0.02

    params = prepare_channel_mix_params(time_mix_k, time_mix_r,
                                        w_key, w_receptance, w_value)

    # row_block=96 deliberately exercises boundary rows, a tile that straddles a
    # sequence boundary, and tail-row padding at this small demo size.
    # Use larger (256-512) row blocks in production.
    out = rwkv_channel_mix(x, params, row_block=96)
    out = jax.block_until_ready(out)

    ref = _reference(x, time_mix_k, time_mix_r, w_key, w_receptance, w_value)
    assert out.shape == (B, T, C)
    # bf16 activation I/O + bf16 matmul operands (f32 accumulate) -> loosened tol
    assert jnp.allclose(out, ref, atol=2e-3, rtol=2e-2), "mismatch vs reference"

    print("KERNEL_OK")
</pallas_src>

<mosaic_0001>
module attributes {stable_mosaic.version = 11 : i64} {
  func.func @_channel_mix_kernel(%arg0: i32, %arg1: memref<96x128xbf16, #tpu.memory_space<vmem>>, %arg2: memref<1x1x128xbf16, #tpu.memory_space<vmem>>, %arg3: memref<2x128xf32, #tpu.memory_space<vmem>>, %arg4: memref<128x128xbf16, #tpu.memory_space<vmem>>, %arg5: memref<128x128xbf16, #tpu.memory_space<vmem>>, %arg6: memref<128x128xbf16, #tpu.memory_space<vmem>>, %arg7: memref<96x128xf32, #tpu.memory_space<vmem>>) attributes {dimension_semantics = [#tpu.dimension_semantics<parallel>], iteration_bounds = array<i64: 3>, scalar_prefetch = 0 : i64, scratch_operands = 0 : i64, tpu.core_type = #tpu.core_type<tc>, window_params = [{transform_indices = @transform_0, window_bounds = array<i64: 96, 128>}, {transform_indices = @transform_1, window_bounds = array<i64: 1, 1, 128>}, {pipeline_mode = #tpu.pipeline_mode<synchronous>, transform_indices = @transform_2, window_bounds = array<i64: 2, 128>}, {pipeline_mode = #tpu.pipeline_mode<synchronous>, transform_indices = @transform_3, window_bounds = array<i64: 128, 128>}, {pipeline_mode = #tpu.pipeline_mode<synchronous>, transform_indices = @transform_4, window_bounds = array<i64: 128, 128>}, {pipeline_mode = #tpu.pipeline_mode<synchronous>, transform_indices = @transform_5, window_bounds = array<i64: 128, 128>}, {transform_indices = @transform_6, window_bounds = array<i64: 96, 128>}]} {
    %c0 = arith.constant 0 : index
    %c0_0 = arith.constant 0 : index
    %0 = vector.load %arg1[%c0, %c0_0] : memref<96x128xbf16, #tpu.memory_space<vmem>>, vector<96x128xbf16>
    %1 = arith.extf %0 : vector<96x128xbf16> to vector<96x128xf32>
    %c1_i32 = arith.constant 1 : i32
    %2 = tpu.dynamic_rotate %1 by %c1_i32 dim 0 : vector<96x128xf32>, i32 -> vector<96x128xf32>
    %3 = tpu.iota {dimensions = array<i32: 0>} : vector<96x1xi32>
    %c0_1 = arith.constant 0 : index
    %c0_2 = arith.constant 0 : index
    %c0_3 = arith.constant 0 : index
    %4 = vector.load %arg2[%c0_1, %c0_2, %c0_3] : memref<1x1x128xbf16, #tpu.memory_space<vmem>>, vector<1x1x128xbf16>
    %5 = vector.shape_cast %4 : vector<1x1x128xbf16> to vector<1x128xbf16>
    %6 = arith.extf %5 : vector<1x128xbf16> to vector<1x128xf32>
    %c0_i32 = arith.constant 0 : i32
    %7 = vector.broadcast %c0_i32 : i32 to vector<96x1xi32>
    %8 = arith.cmpi eq, %3, %7 : vector<96x1xi32>
    %9 = vector.shape_cast %8 : vector<96x1xi1> to vector<96x1xi1>
    %10 = vector.broadcast %9 : vector<96x1xi1> to vector<96x128xi1>
    %11 = vector.shape_cast %6 : vector<1x128xf32> to vector<1x128xf32>
    %12 = vector.broadcast %11 : vector<1x128xf32> to vector<96x128xf32>
    %13 = arith.select %10, %12, %2 : vector<96x128xi1>, vector<96x128xf32>
    %c96_i32 = arith.constant 96 : i32
    %14 = arith.muli %arg0, %c96_i32 : i32
    %15 = vector.broadcast %14 : i32 to vector<96x1xi32>
    %16 = arith.addi %15, %3 : vector<96x1xi32>
    %c128_i32 = arith.constant 128 : i32
    %c0_i32_4 = arith.constant 0 : i32
    %17 = arith.cmpi eq, %c128_i32, %c0_i32_4 : i32
    %c1_i32_5 = arith.constant 1 : i32
    %18 = arith.select %17, %c1_i32_5, %c128_i32 : i32
    %19 = vector.broadcast %18 : i32 to vector<96x1xi32>
    %20 = arith.remsi %16, %19 : vector<96x1xi32>
    %c0_i32_6 = arith.constant 0 : i32
    %21 = vector.broadcast %c0_i32_6 : i32 to vector<96x1xi32>
    %22 = arith.cmpi ne, %20, %21 : vector<96x1xi32>
    %c0_i32_7 = arith.constant 0 : i32
    %23 = vector.broadcast %c0_i32_7 : i32 to vector<96x1xi32>
    %24 = arith.cmpi slt, %20, %23 : vector<96x1xi32>
    %c0_i32_8 = arith.constant 0 : i32
    %25 = arith.cmpi slt, %18, %c0_i32_8 : i32
    %26 = vector.broadcast %25 : i1 to vector<96x1xi1>
    %27 = vector.broadcast %26 : vector<96x1xi1> to vector<96x1xi1>
    %28 = arith.xori %24, %27 : vector<96x1xi1>
    %29 = arith.andi %28, %22 : vector<96x1xi1>
    %30 = vector.broadcast %18 : i32 to vector<96x1xi32>
    %31 = arith.addi %20, %30 : vector<96x1xi32>
    %32 = arith.select %29, %31, %20 : vector<96x1xi1>, vector<96x1xi32>
    %c0_i32_9 = arith.constant 0 : i32
    %33 = vector.broadcast %c0_i32_9 : i32 to vector<96x1xi32>
    %34 = arith.cmpi eq, %32, %33 : vector<96x1xi32>
    %cst = arith.constant 0.000000e+00 : f32
    %35 = vector.shape_cast %34 : vector<96x1xi1> to vector<96x1xi1>
    %36 = vector.broadcast %35 : vector<96x1xi1> to vector<96x128xi1>
    %37 = vector.broadcast %cst : f32 to vector<96x128xf32>
    %38 = arith.select %36, %37, %13 : vector<96x128xi1>, vector<96x128xf32>
    %c0_10 = arith.constant 0 : index
    %c0_11 = arith.constant 0 : index
    %39 = vector.load %arg3[%c0_10, %c0_11] : memref<2x128xf32, #tpu.memory_space<vmem>>, vector<2x128xf32>
    %40 = arith.subf %1, %38 : vector<96x128xf32>
    %41 = vector.extract_strided_slice %39 {offsets = [0, 0], sizes = [1, 128], strides = [1, 1]} : vector<2x128xf32> to vector<1x128xf32>
    %42 = vector.broadcast %41 : vector<1x128xf32> to vector<96x128xf32>
    %43 = arith.mulf %42, %40 : vector<96x128xf32>
    %44 = arith.addf %38, %43 : vector<96x128xf32>
    %45 = vector.extract_strided_slice %39 {offsets = [1, 0], sizes = [1, 128], strides = [1, 1]} : vector<2x128xf32> to vector<1x128xf32>
    %46 = vector.broadcast %45 : vector<1x128xf32> to vector<96x128xf32>
    %47 = arith.mulf %46, %40 : vector<96x128xf32>
    %48 = arith.addf %38, %47 : vector<96x128xf32>
    %49 = arith.truncf %48 : vector<96x128xf32> to vector<96x128xbf16>
    %c0_12 = arith.constant 0 : index
    %c0_13 = arith.constant 0 : index
    %50 = vector.load %arg5[%c0_12, %c0_13] : memref<128x128xbf16, #tpu.memory_space<vmem>>, vector<128x128xbf16>
    %cst_14 = arith.constant dense<0.000000e+00> : vector<96x128xf32>
    %51 = tpu.matmul %49, %50, %cst_14 {dimension_numbers = #tpu.dot_dimension_numbers<[1], [0], [0], [1], [0, 0, 1, 1], [], []>} : vector<96x128xbf16>, vector<128x128xbf16>, vector<96x128xf32> -> vector<96x128xf32>
    %52 = arith.negf %51 : vector<96x128xf32>
    %53 = math.exp %52 : vector<96x128xf32>
    %cst_15 = arith.constant 1.000000e+00 : f32
    %54 = vector.broadcast %cst_15 : f32 to vector<96x128xf32>
    %55 = arith.addf %54, %53 : vector<96x128xf32>
    %56 = arith.divf %54, %55 : vector<96x128xf32>
    %57 = arith.truncf %44 : vector<96x128xf32> to vector<96x128xbf16>
    %cst_16 = arith.constant 0.000000e+00 : f32
    %58 = vector.broadcast %cst_16 : f32 to vector<96x128xf32>
    %c0_17 = arith.constant 0 : index
    %c0_18 = arith.constant 0 : index
    %59 = vector.load %arg4[%c0_17, %c0_18] : memref<128x128xbf16, #tpu.memory_space<vmem>>, vector<128x128xbf16>
    %cst_19 = arith.constant dense<0.000000e+00> : vector<96x128xf32>
    %60 = tpu.matmul %57, %59, %cst_19 {dimension_numbers = #tpu.dot_dimension_numbers<[1], [0], [0], [1], [0, 0, 1, 1], [], []>} : vector<96x128xbf16>, vector<128x128xbf16>, vector<96x128xf32> -> vector<96x128xf32>
    %cst_20 = arith.constant 0.000000e+00 : f32
    %61 = vector.broadcast %cst_20 : f32 to vector<96x128xf32>
    %62 = arith.maximumf %60, %61 : vector<96x128xf32>
    %63 = arith.mulf %62, %62 : vector<96x128xf32>
    %64 = arith.truncf %63 : vector<96x128xf32> to vector<96x128xbf16>
    %c0_21 = arith.constant 0 : index
    %c0_22 = arith.constant 0 : index
    %65 = vector.load %arg6[%c0_21, %c0_22] : memref<128x128xbf16, #tpu.memory_space<vmem>>, vector<128x128xbf16>
    %cst_23 = arith.constant dense<0.000000e+00> : vector<96x128xf32>
    %66 = tpu.matmul %64, %65, %cst_23 {dimension_numbers = #tpu.dot_dimension_numbers<[1], [0], [0], [1], [0, 0, 1, 1], [], []>} : vector<96x128xbf16>, vector<128x128xbf16>, vector<96x128xf32> -> vector<96x128xf32>
    %67 = arith.addf %58, %66 : vector<96x128xf32>
    %68 = arith.mulf %56, %67 : vector<96x128xf32>
    %c0_24 = arith.constant 0 : index
    %c0_25 = arith.constant 0 : index
    %69 = vector.load %arg7[%c0_24, %c0_25] : memref<96x128xf32, #tpu.memory_space<vmem>>, vector<96x128xf32>
    tpu.vector_store %arg7[%c0_24, %c0_25], %68 {strides = array<i32>} : memref<96x128xf32, #tpu.memory_space<vmem>>, vector<96x128xf32>,
    return
  }
  func.func @transform_0(%arg0: i32) -> (i32, i32) {
    %c0_i32 = arith.constant 0 : i32
    %c0_i32_0 = arith.constant 0 : i32
    return %arg0, %c0_i32 : i32, i32
  }
  func.func @transform_1(%arg0: i32) -> (i32, i32, i32) {
    %c0_i32 = arith.constant 0 : i32
    %c0_i32_0 = arith.constant 0 : i32
    %c0_i32_1 = arith.constant 0 : i32
    return %arg0, %c0_i32, %c0_i32_0 : i32, i32, i32
  }
  func.func @transform_2(%arg0: i32) -> (i32, i32) {
    %c0_i32 = arith.constant 0 : i32
    %c0_i32_0 = arith.constant 0 : i32
    %c0_i32_1 = arith.constant 0 : i32
    return %c0_i32, %c0_i32_0 : i32, i32
  }
  func.func @transform_3(%arg0: i32) -> (i32, i32) {
    %c0_i32 = arith.constant 0 : i32
    %c0_i32_0 = arith.constant 0 : i32
    %c0_i32_1 = arith.constant 0 : i32
    return %c0_i32, %c0_i32_0 : i32, i32
  }
  func.func @transform_4(%arg0: i32) -> (i32, i32) {
    %c0_i32 = arith.constant 0 : i32
    %c0_i32_0 = arith.constant 0 : i32
    %c0_i32_1 = arith.constant 0 : i32
    return %c0_i32, %c0_i32_0 : i32, i32
  }
  func.func @transform_5(%arg0: i32) -> (i32, i32) {
    %c0_i32 = arith.constant 0 : i32
    %c0_i32_0 = arith.constant 0 : i32
    %c0_i32_1 = arith.constant 0 : i32
    return %c0_i32, %c0_i32_0 : i32, i32
  }
  func.func @transform_6(%arg0: i32) -> (i32, i32) {
    %c0_i32 = arith.constant 0 : i32
    %c0_i32_0 = arith.constant 0 : i32
    return %arg0, %c0_i32 : i32, i32
  }
}

</mosaic_0001>

<llo_original>
// kernel: tpu_custom_call.1
$region0: #{tpu_custom_call.1}
  #allocation0 [shape = 'u32[]', space=smem, size = 0x4, offset = 0x4, fixed_abs, tag = 'smem constant byte address 0x4 - core index']
  #allocation1 [shape = 'u32[72,128]{1,0:T(1,128)}', space=vmem, size = 0x9000, scoped, tag = 'internal scratch']
  %s0 = inlined_call_operand.hbm [shape: bf16[288,128], index: 0, kind: input, shape index: {}]
  %s1 = inlined_call_operand.vmem [shape: bf16[3,1,128], index: 1, kind: input, shape index: {}]
  %s2 = inlined_call_operand.vmem [shape: f32[2,128], index: 2, kind: input, shape index: {}]
  %s3 = inlined_call_operand.hbm [shape: bf16[128,128], index: 3, kind: input, shape index: {}]
  %s4 = inlined_call_operand.hbm [shape: bf16[128,128], index: 4, kind: input, shape index: {}]
  %s5 = inlined_call_operand.hbm [shape: bf16[128,128], index: 5, kind: input, shape index: {}]
  %s6 = inlined_call_operand.hbm [shape: f32[288,128], index: 6, kind: output, shape index: {}]
  %s7 = sld [smem:[#allocation0]]
  $region73: #{tpu_custom_call.1} parent=0
    _
  %s9 = ssub.s32 1, %s7
  %s10 = scalar_select 0, %s9, %s7
  $region1: #{tpu_custom_call.1} parent=0
    #allocation2 [shape = 'u8[49152]{0}', space=vmem, size = 0xc000, scoped, tag = 'input window, operand 0']
    #allocation3 [shape = 's32[2]{0}', space=sflag, size = 0x8, scoped, tag = 'scoped memory for tpu_custom_call.1']
    #allocation4 [shape = 's32[2]{0}', space=sflag, size = 0x8, scoped, tag = 'scoped memory for tpu_custom_call.1']
    #allocation5 [shape = 'u8[32768]{0}', space=vmem, size = 0x8000, scoped, tag = 'input window, operand 3, single buffered']
    #allocation6 [shape = 's32[1]{0}', space=sflag, size = 0x4, scoped, tag = 'scoped memory for tpu_custom_call.1']
    #allocation7 [shape = 'u8[32768]{0}', space=vmem, size = 0x8000, scoped, tag = 'input window, operand 4, single buffered']
    #allocation8 [shape = 'u8[32768]{0}', space=vmem, size = 0x8000, scoped, tag = 'input window, operand 5, single buffered']
    #allocation9 [shape = 's32[1]{0}', space=sflag, size = 0x4, scoped, tag = 'scoped memory for tpu_custom_call.1']
    #allocation10 [shape = 'u8[98304]{0}', space=vmem, size = 0x18000, scoped, tag = 'output window, operand 0']
    %11 = vsyncpa [#allocation3], 0
    %s12 = scalar_lea.sflag [#allocation3], 1
    %13 = vsyncpa %s12, 0
    %14 = vsyncpa [#allocation6], 0
    %15 = vsyncpa [#allocation9], 0
    %16 = vsyncpa [#allocation4], 0
    %s17 = scalar_lea.sflag [#allocation4], 1
    %18 = vsyncpa %s17, 0
    loop: start=0, step=1, limit=5
    $region2: #{tpu_custom_call.1} parent=1 // loop_pre_header
      _
    $region3: #{tpu_custom_call.1} parent=1 // loop_header
      %s20 = sphi 0, %s24
      %p21 = scmp.ge.s32.totalorder %s20, 5
      %s30 = sphi 0, %s32
      %s33 = sphi 0, %s30
      %s34 = sphi 0, %s33
      %s50 = sphi 0, %s34
      %s56 = sphi 0, %s58
      %s59 = sphi 0, %s56
      %s60 = sphi 0, %s59
      %s76 = sphi 0, %s60
      %s80 = sphi 0, %s80
      %s82 = sphi 0, %s80
      %s83 = sphi 0, %s82
      %s97 = sphi 0, %s83
      %s101 = sphi 0, %s101
      %s103 = sphi 0, %s101
      %s104 = sphi 0, %s103
      %s118 = sphi 0, %s104
      %s122 = sphi 0, %s122
      %s124 = sphi 0, %s122
      %s125 = sphi 0, %s124
      %s139 = sphi 0, %s125
      %s143 = sphi 0, %s143
      %s145 = sphi 0, %s143
      %s146 = sphi 0, %s145
      %s160 = sphi 0, %s146
      %s166 = sphi 0, %s168
      %s169 = sphi 0, %s166
      %s170 = sphi 0, %s169
      %s186 = sphi 0, %s170
    $region4: #{tpu_custom_call.1} parent=1 // loop_header_branch
      %23 = sbr.rel (%p21) target = $region8
    $region5: #{tpu_custom_call.1} parent=1 // loop_body
      %s25 = ssub.s32 %s20, 1
      %s26 = ssub.s32 %s20, 2
      %s27 = sadd.s32 %s20, 1
      %s28 = ssub.s32 %s20, %s27
      %p29 = scmp.eq.s32.totalorder %s28, 0
      %s31 = sadd.s32 %s30, 1
      %s32 = scalar_select %p29, %s30, %s31
      %p35 = pneg %p29
      %p36 = scmp.eq.s32.totalorder %s20, 2
      %p37 = por %p35, %p36
      %p38 = scmp.ne.s32.totalorder %s30, %s33
      %p39 = scmp.eq.s32.totalorder %s20, 0
      %p40 = por %p38, %p39
      %p41 = scmp.ne.s32.totalorder %s30, %s33
      %p42 = scmp.eq.s32.totalorder %s25, 2
      %p43 = por %p41, %p42
      %p44 = scmp.ne.s32.totalorder %s33, %s34
      %p45 = scmp.eq.s32.totalorder %s25, 0
      %p46 = por %p44, %p45
      %p47 = scmp.ne.s32.totalorder %s33, %s34
      %p48 = scmp.eq.s32.totalorder %s26, 2
      %p49 = por %p47, %p48
      %p51 = scmp.ne.s32.totalorder %s34, %s50
      %p52 = scmp.eq.s32.totalorder %s26, 0
      %p53 = por %p51, %p52
      %s54 = ssub.s32 %s20, %s27
      %p55 = scmp.eq.s32.totalorder %s54, 0
      %s57 = sadd.s32 %s56, 1
      %s58 = scalar_select %p55, %s56, %s57
      %p61 = pneg %p55
      %p62 = scmp.eq.s32.totalorder %s20, 2
      %p63 = por %p61, %p62
      %p64 = scmp.ne.s32.totalorder %s56, %s59
      %p65 = scmp.eq.s32.totalorder %s20, 0
      %p66 = por %p64, %p65
      %p67 = scmp.ne.s32.totalorder %s56, %s59
      %p68 = scmp.eq.s32.totalorder %s25, 2
      %p69 = por %p67, %p68
      %p70 = scmp.ne.s32.totalorder %s59, %s60
      %p71 = scmp.eq.s32.totalorder %s25, 0
      %p72 = por %p70, %p71
      %p73 = scmp.ne.s32.totalorder %s59, %s60
      %p74 = scmp.eq.s32.totalorder %s26, 2
      %p75 = por %p73, %p74
      %p77 = scmp.ne.s32.totalorder %s60, %s76
      %p78 = scmp.eq.s32.totalorder %s26, 0
      %p79 = por %p77, %p78
      %s81 = sadd.s32 %s80, 1
      %p84 = scmp.eq.s32.totalorder %s20, 2
      %p85 = scmp.ne.s32.totalorder %s80, %s82
      %p86 = scmp.eq.s32.totalorder %s20, 0
      %p87 = por %p85, %p86
      %p88 = scmp.ne.s32.totalorder %s80, %s82
      %p89 = scmp.eq.s32.totalorder %s25, 2
      %p90 = por %p88, %p89
      %p91 = scmp.ne.s32.totalorder %s82, %s83
      %p92 = scmp.eq.s32.totalorder %s25, 0
      %p93 = por %p91, %p92
      %p94 = scmp.ne.s32.totalorder %s82, %s83
      %p95 = scmp.eq.s32.totalorder %s26, 2
      %p96 = por %p94, %p95
      %p98 = scmp.ne.s32.totalorder %s83, %s97
      %p99 = scmp.eq.s32.totalorder %s26, 0
      %p100 = por %p98, %p99
      %s102 = sadd.s32 %s101, 1
      %p105 = scmp.eq.s32.totalorder %s20, 2
      %p106 = scmp.ne.s32.totalorder %s101, %s103
      %p107 = scmp.eq.s32.totalorder %s20, 0
      %p108 = por %p106, %p107
      %p109 = scmp.ne.s32.totalorder %s101, %s103
      %p110 = scmp.eq.s32.totalorder %s25, 2
      %p111 = por %p109, %p110
      %p112 = scmp.ne.s32.totalorder %s103, %s104
      %p113 = scmp.eq.s32.totalorder %s25, 0
      %p114 = por %p112, %p113
      %p115 = scmp.ne.s32.totalorder %s103, %s104
      %p116 = scmp.eq.s32.totalorder %s26, 2
      %p117 = por %p115, %p116
      %p119 = scmp.ne.s32.totalorder %s104, %s118
      %p120 = scmp.eq.s32.totalorder %s26, 0
      %p121 = por %p119, %p120
      %s123 = sadd.s32 %s122, 1
      %p126 = scmp.eq.s32.totalorder %s20, 2
      %p127 = scmp.ne.s32.totalorder %s122, %s124
      %p128 = scmp.eq.s32.totalorder %s20, 0
      %p129 = por %p127, %p128
      %p130 = scmp.ne.s32.totalorder %s122, %s124
      %p131 = scmp.eq.s32.totalorder %s25, 2
      %p132 = por %p130, %p131
      %p133 = scmp.ne.s32.totalorder %s124, %s125
      %p134 = scmp.eq.s32.totalorder %s25, 0
      %p135 = por %p133, %p134
      %p136 = scmp.ne.s32.totalorder %s124, %s125
      %p137 = scmp.eq.s32.totalorder %s26, 2
      %p138 = por %p136, %p137
      %p140 = scmp.ne.s32.totalorder %s125, %s139
      %p141 = scmp.eq.s32.totalorder %s26, 0
      %p142 = por %p140, %p141
      %s144 = sadd.s32 %s143, 1
      %p147 = scmp.eq.s32.totalorder %s20, 2
      %p148 = scmp.ne.s32.totalorder %s143, %s145
      %p149 = scmp.eq.s32.totalorder %s20, 0
      %p150 = por %p148, %p149
      %p151 = scmp.ne.s32.totalorder %s143, %s145
      %p152 = scmp.eq.s32.totalorder %s25, 2
      %p153 = por %p151, %p152
      %p154 = scmp.ne.s32.totalorder %s145, %s146
      %p155 = scmp.eq.s32.totalorder %s25, 0
      %p156 = por %p154, %p155
      %p157 = scmp.ne.s32.totalorder %s145, %s146
      %p158 = scmp.eq.s32.totalorder %s26, 2
      %p159 = por %p157, %p158
      %p161 = scmp.ne.s32.totalorder %s146, %s160
      %p162 = scmp.eq.s32.totalorder %s26, 0
      %p163 = por %p161, %p162
      %s164 = ssub.s32 %s20, %s27
      %p165 = scmp.eq.s32.totalorder %s164, 0
      %s167 = sadd.s32 %s166, 1
      %s168 = scalar_select %p165, %s166, %s167
      %p171 = pneg %p165
      %p172 = scmp.eq.s32.totalorder %s20, 2
      %p173 = por %p171, %p172
      %p174 = scmp.ne.s32.totalorder %s166, %s169
      %p175 = scmp.eq.s32.totalorder %s20, 0
      %p176 = por %p174, %p175
      %p177 = scmp.ne.s32.totalorder %s166, %s169
      %p178 = scmp.eq.s32.totalorder %s25, 2
      %p179 = por %p177, %p178
      %p180 = scmp.ne.s32.totalorder %s169, %s170
      %p181 = scmp.eq.s32.totalorder %s25, 0
      %p182 = por %p180, %p181
      %p183 = scmp.ne.s32.totalorder %s169, %s170
      %p184 = scmp.eq.s32.totalorder %s26, 2
      %p185 = por %p183, %p184
      %p187 = scmp.ne.s32.totalorder %s170, %s186
      %p188 = scmp.eq.s32.totalorder %s26, 0
      %p189 = por %p187, %p188
      %p190 = scmp.le.s32.totalorder 1, %s20
      %p191 = scmp.lt.s32.totalorder %s20, 4
      %p192 = pnand %p190, %p191
      %p193 = pneg %p192
      // Predicated region
      $region9: #{tpu_custom_call.1} parent=5 // pred_check
        _
      $region10: #{tpu_custom_call.1} parent=5 // pred_check_branch
        %195 = sbr.rel (%p192) target = $region12
      $region11: #{tpu_custom_call.1} parent=5 // pred_region
        %s196 = ssub.s32 %s20, 1
        // Predicated region
        $region13: #{tpu_custom_call.1} parent=11 // pred_check
          %p197 = pneg %p93
        $region14: #{tpu_custom_call.1} parent=11 // pred_check_branch
          %199 = sbr.rel (%p197) target = $region16
        $region15: #{tpu_custom_call.1} parent=11 // pred_region
          _
        $region16: #{tpu_custom_call.1} parent=11 // pred_fallthru
          _
        // Predicated region
        $region17: #{tpu_custom_call.1} parent=11 // pred_check
          %p200 = pneg %p114
        $region18: #{tpu_custom_call.1} parent=11 // pred_check_branch
          %202 = sbr.rel (%p200) target = $region20
        $region19: #{tpu_custom_call.1} parent=11 // pred_region
          %204 = vsyncadd [#allocation6], 0
          %s205 = sshll.u32 %s3, 4
          %s206 = int_to_ptr.hbm [resolvable:$true] %s205
          %s207 = sshll.u32 [#allocation5], 4
          %s208 = int_to_ptr.vmem [resolvable:$true] %s207
          %213 = dma.hbm_to_vmem [thread:$0]  %s206, 1024, %s208, [#allocation6], 64, 64, 4
        $region20: #{tpu_custom_call.1} parent=11 // pred_fallthru
          _
        // Predicated region
        $region21: #{tpu_custom_call.1} parent=11 // pred_check
          %p214 = pneg %p135
        $region22: #{tpu_custom_call.1} parent=11 // pred_check_branch
          %216 = sbr.rel (%p214) target = $region24
        $region23: #{tpu_custom_call.1} parent=11 // pred_region
          %218 = vsyncadd [#allocation6], 0
          %s219 = sshll.u32 %s4, 4
          %s220 = int_to_ptr.hbm [resolvable:$true] %s219
          %s221 = sshll.u32 [#allocation7], 4
          %s222 = int_to_ptr.vmem [resolvable:$true] %s221
          %227 = dma.hbm_to_vmem [thread:$0]  %s220, 1024, %s222, [#allocation6], 64, 64, 4
        $region24: #{tpu_custom_call.1} parent=11 // pred_fallthru
          _
        // Predicated region
        $region25: #{tpu_custom_call.1} parent=11 // pred_check
          %p228 = pneg %p156
        $region26: #{tpu_custom_call.1} parent=11 // pred_check_branch
          %230 = sbr.rel (%p228) target = $region28
        $region27: #{tpu_custom_call.1} parent=11 // pred_region
          %232 = vsyncadd [#allocation9], 0
          %s233 = sshll.u32 %s5, 4
          %s234 = int_to_ptr.hbm [resolvable:$true] %s233
          %s235 = sshll.u32 [#allocation8], 4
          %s236 = int_to_ptr.vmem [resolvable:$true] %s235
          %241 = dma.hbm_to_vmem [thread:$0]  %s234, 1024, %s236, [#allocation9], 64, 64, 4
        $region28: #{tpu_custom_call.1} parent=11 // pred_fallthru
          _
      $region12: #{tpu_custom_call.1} parent=5 // pred_fallthru
        _
      %p242 = scmp.lt.s32.totalorder %s20, 3
      // Predicated region
      $region29: #{tpu_custom_call.1} parent=5 // pred_check
        %p243 = pneg %p242
      $region30: #{tpu_custom_call.1} parent=5 // pred_check_branch
        %245 = sbr.rel (%p243) target = $region32
      $region31: #{tpu_custom_call.1} parent=5 // pred_region
        // Predicated region
        $region33: #{tpu_custom_call.1} parent=31 // pred_check
          %p246 = pneg %p40
        $region34: #{tpu_custom_call.1} parent=31 // pred_check_branch
          %248 = sbr.rel (%p246) target = $region36
        $region35: #{tpu_custom_call.1} parent=31 // pred_region
          %s249 = sand.u32 %s30, 1
          %s250 = scalar_lea.sflag [#allocation3], %s249
          %s251 = sand.u32 %s30, 1
          %s252 = smul.addr %s251, 48
          %s253 = scalar_lea.vmem [#allocation2], %s252
          %s254 = smul.u32 12, %s20
          %256 = vsyncadd %s250, 0
          %s257 = smul.addr %s254, 4
          %s258 = scalar_lea.hbm %s0, %s257
          %s259 = sshll.u32 %s258, 4
          %s260 = int_to_ptr.hbm [resolvable:$true] %s259
          %s261 = sshll.u32 %s253, 4
          %s262 = int_to_ptr.vmem [resolvable:$true] %s261
          %267 = dma.hbm_to_vmem [thread:$0]  %s260, 768, %s262, %s250, 64, 64, 4
        $region36: #{tpu_custom_call.1} parent=31 // pred_fallthru
          _
        // Predicated region
        $region37: #{tpu_custom_call.1} parent=31 // pred_check
          %p268 = pneg %p66
        $region38: #{tpu_custom_call.1} parent=31 // pred_check_branch
          %270 = sbr.rel (%p268) target = $region40
        $region39: #{tpu_custom_call.1} parent=31 // pred_region
          %p271 = scmp.lt.s32.totalorder %s20, 2
          %s272 = scalar_select %p271, %s20, 2
          %s273 = scalar_lea.vmem %s1, %s272
        $region40: #{tpu_custom_call.1} parent=31 // pred_fallthru
          _
      $region32: #{tpu_custom_call.1} parent=5 // pred_fallthru
        _
      %p274 = scmp.le.s32.totalorder 1, %s20
      %p275 = scmp.lt.s32.totalorder %s20, 4
      %p276 = pnand %p274, %p275
      %p277 = pneg %p276
      // Predicated region
      $region41: #{tpu_custom_call.1} parent=5 // pred_check
        _
      $region42: #{tpu_custom_call.1} parent=5 // pred_check_branch
        %279 = sbr.rel (%p276) target = $region44
      $region43: #{tpu_custom_call.1} parent=5 // pred_region
        %s280 = ssub.s32 %s20, 1
        %s281 = sand.u32 %s33, 1
        %s282 = scalar_lea.sflag [#allocation3], %s281
        %s283 = sand.u32 %s33, 1
        %s284 = smul.addr %s283, 48
        %s285 = scalar_lea.vmem [#allocation2], %s284
        // Predicated region
        $region45: #{tpu_custom_call.1} parent=43 // pred_check
          %p286 = pneg %p46
        $region46: #{tpu_custom_call.1} parent=43 // pred_check_branch
          %288 = sbr.rel (%p286) target = $region48
        $region47: #{tpu_custom_call.1} parent=43 // pred_region
          %290 = dma.done %s282, 768
        $region48: #{tpu_custom_call.1} parent=43 // pred_fallthru
          _
        // Predicated region
        $region49: #{tpu_custom_call.1} parent=43 // pred_check
          %p291 = pneg %p114
        $region50: #{tpu_custom_call.1} parent=43 // pred_check_branch
          %293 = sbr.rel (%p291) target = $region52
        $region51: #{tpu_custom_call.1} parent=43 // pred_region
          %295 = dma.done [#allocation6], 1024
        $region52: #{tpu_custom_call.1} parent=43 // pred_fallthru
          _
        // Predicated region
        $region53: #{tpu_custom_call.1} parent=43 // pred_check
          %p296 = pneg %p135
        $region54: #{tpu_custom_call.1} parent=43 // pred_check_branch
          %298 = sbr.rel (%p296) target = $region56
        $region55: #{tpu_custom_call.1} parent=43 // pred_region
          %300 = dma.done [#allocation6], 1024
        $region56: #{tpu_custom_call.1} parent=43 // pred_fallthru
          _
        // Predicated region
        $region57: #{tpu_custom_call.1} parent=43 // pred_check
          %p301 = pneg %p156
        $region58: #{tpu_custom_call.1} parent=43 // pred_check_branch
          %303 = sbr.rel (%p301) target = $region60
        $region59: #{tpu_custom_call.1} parent=43 // pred_region
          %305 = dma.done [#allocation9], 1024
        $region60: #{tpu_custom_call.1} parent=43 // pred_fallthru
          _
        %s306 = sand.u32 %s33, 1
        %s307 = scalar_lea.sflag [#allocation3], %s306
        %s308 = sand.u32 %s33, 1
        %s309 = smul.addr %s308, 48
        %s310 = scalar_lea.vmem [#allocation2], %s309
        %p311 = pneg %p46
        %p312 = pneg %p43
        %p313 = scmp.lt.s32.totalorder %s25, 2
        %s314 = scalar_select %p313, %s25, 2
        %s315 = scalar_lea.vmem %s1, %s314
        %p316 = pneg %p72
        %p317 = pneg %p69
        %p318 = pneg %p93
        %p319 = pneg %p90
        %p320 = pneg %p114
        %p321 = pneg %p111
        %p322 = pneg %p135
        %p323 = pneg %p132
        %p324 = pneg %p156
        %p325 = pneg %p153
        %p326 = pneg %p182
        %p327 = pneg %p179
        %s328 = sand.u32 %s169, 1
        %s329 = scalar_lea.sflag [#allocation4], %s328
        %s330 = sand.u32 %s169, 1
        %s331 = smul.addr %s330, 96
        %s332 = scalar_lea.vmem [#allocation10], %s331
        %s333 = smul.u32 12, %s25
        %p334 = scmp.lt.s32.totalorder %s25, 2
        %s335 = scalar_select %p334, %s25, 2
        %s336 = scalar_lea.vmem %s1, %s335
        %s337 = smul.u32 12, %s25
        %v338 = vld [vmem:[%s285] sm:$0xf]
        %v339 = vld [vmem:[%s285 + $0x4] sm:$0xf]
        %v340 = vld [vmem:[%s285 + $0x8] sm:$0xf]
        %v341 = vld [vmem:[%s285 + $0xc] sm:$0xf]
        %v342 = vld [vmem:[%s285 + $0x10] sm:$0xf]
        %v343 = vld [vmem:[%s285 + $0x14] sm:$0xf]
        %v344 = vld [vmem:[%s285 + $0x18] sm:$0xf]
        %v345 = vld [vmem:[%s285 + $0x1c] sm:$0xf]
        %v346 = vld [vmem:[%s285 + $0x20] sm:$0xf]
        %v347 = vld [vmem:[%s285 + $0x24] sm:$0xf]
        %v348 = vld [vmem:[%s285 + $0x28] sm:$0xf]
        %v349 = vld [vmem:[%s285 + $0x2c] sm:$0xf]
        %v350 = vunpack.c.l.bf16 %v338
        %v351 = vunpack.c.l.bf16 %v339
        %v352 = vunpack.c.l.bf16 %v340
        %v353 = vunpack.c.l.bf16 %v341
        %v354 = vunpack.c.l.bf16 %v342
        %v355 = vunpack.c.l.bf16 %v343
        %v356 = vunpack.c.l.bf16 %v344
        %v357 = vunpack.c.l.bf16 %v345
        %v358 = vunpack.c.l.bf16 %v346
        %v359 = vunpack.c.l.bf16 %v347
        %v360 = vunpack.c.l.bf16 %v348
        %v361 = vunpack.c.l.bf16 %v349
        %v362 = vrot.slane %v350, 7
        %v363 = vrot.slane %v351, 7
        %v364 = vrot.slane %v352, 7
        %v365 = vrot.slane %v353, 7
        %v366 = vrot.slane %v354, 7
        %v367 = vrot.slane %v355, 7
        %v368 = vrot.slane %v356, 7
        %v369 = vrot.slane %v357, 7
        %v370 = vrot.slane %v358, 7
        %v371 = vrot.slane %v359, 7
        %v372 = vrot.slane %v360, 7
        %v373 = vrot.slane %v361, 7
        %v374 = vlaneseq
        %v375 = vshrl.u32 %v374, 7
        %vm376 = vcmp.lt.s32.totalorder %v375, 1
        %v377 = vsel %vm376, %v372, %v373
        %v378 = vsel %vm376, %v371, %v372
        %v379 = vsel %vm376, %v370, %v371
        %v380 = vsel %vm376, %v369, %v370
        %v381 = vsel %vm376, %v368, %v369
        %v382 = vsel %vm376, %v367, %v368
        %v383 = vsel %vm376, %v366, %v367
        %v384 = vsel %vm376, %v365, %v366
        %v385 = vsel %vm376, %v364, %v365
        %v386 = vsel %vm376, %v363, %v364
        %v387 = vsel %vm376, %v362, %v363
        %v388 = vsel %vm376, %v373, %v362
        %v389 = vadd.s32 %v375, 8
        %v390 = vadd.s32 %v375, 16
        %v391 = vadd.s32 %v375, 24
        %v392 = vadd.s32 %v375, 32
        %v393 = vadd.s32 %v375, 40
        %v394 = vadd.s32 %v375, 48
        %v395 = vadd.s32 %v375, 56
        %v396 = vadd.s32 %v375, 64
        %v397 = vadd.s32 %v375, 72
        %v398 = vadd.s32 %v375, 80
        %v399 = vadd.s32 %v375, 88
        %v400 = vld [vmem:[%s336] sm:$0x1]
        %v401 = vunpack.c.l.bf16 %v400
        %vm402 = vcmp.eq.s32.totalorder %v375, 0
        %vm403 = vcmp.eq.s32.totalorder %v389, 0
        %vm404 = vcmp.eq.s32.totalorder %v390, 0
        %vm405 = vcmp.eq.s32.totalorder %v391, 0
        %vm406 = vcmp.eq.s32.totalorder %v392, 0
        %vm407 = vcmp.eq.s32.totalorder %v393, 0
        %vm408 = vcmp.eq.s32.totalorder %v394, 0
        %vm409 = vcmp.eq.s32.totalorder %v395, 0
        %vm410 = vcmp.eq.s32.totalorder %v396, 0
        %vm411 = vcmp.eq.s32.totalorder %v397, 0
        %vm412 = vcmp.eq.s32.totalorder %v398, 0
        %vm413 = vcmp.eq.s32.totalorder %v399, 0
        %v414 = vsel %vm402, 1, 0
        %v415 = vsel %vm403, 1, 0
        %v416 = vsel %vm404, 1, 0
        %v417 = vsel %vm405, 1, 0
        %v418 = vsel %vm406, 1, 0
        %v419 = vsel %vm407, 1, 0
        %v420 = vsel %vm408, 1, 0
        %v421 = vsel %vm409, 1, 0
        %v422 = vsel %vm410, 1, 0
        %v423 = vsel %vm411, 1, 0
        %v424 = vsel %vm412, 1, 0
        %v425 = vsel %vm413, 1, 0
        %vm426 = vcmp.eq.s32.totalorder %v414, 1
        %vm427 = vcmp.eq.s32.totalorder %v415, 1
        %vm428 = vcmp.eq.s32.totalorder %v416, 1
        %vm429 = vcmp.eq.s32.totalorder %v417, 1
        %vm430 = vcmp.eq.s32.totalorder %v418, 1
        %vm431 = vcmp.eq.s32.totalorder %v419, 1
        %vm432 = vcmp.eq.s32.totalorder %v420, 1
        %vm433 = vcmp.eq.s32.totalorder %v421, 1
        %vm434 = vcmp.eq.s32.totalorder %v422, 1
        %vm435 = vcmp.eq.s32.totalorder %v423, 1
        %vm436 = vcmp.eq.s32.totalorder %v424, 1
        %vm437 = vcmp.eq.s32.totalorder %v425, 1
        %v438 = vperm.slane %v401, 0
        %v439 = vsel %vm426, %v438, %v388
        %v440 = vsel %vm427, %v438, %v387
        %v441 = vsel %vm428, %v438, %v386
        %v442 = vsel %vm429, %v438, %v385
        %v443 = vsel %vm430, %v438, %v384
        %v444 = vsel %vm431, %v438, %v383
        %v445 = vsel %vm432, %v438, %v382
        %v446 = vsel %vm433, %v438, %v381
        %v447 = vsel %vm434, %v438, %v380
        %v448 = vsel %vm435, %v438, %v379
        %v449 = vsel %vm436, %v438, %v378
        %v450 = vsel %vm437, %v438, %v377
        %s451 = smul.u32 %s25, 96
        %v452 = vstv %s451
        %v453 = vadd.s32 %v452, %v375
        %v454 = vadd.s32 %v452, %v389
        %v455 = vadd.s32 %v452, %v390
        %v456 = vadd.s32 %v452, %v391
        %v457 = vadd.s32 %v452, %v392
        %v458 = vadd.s32 %v452, %v393
        %v459 = vadd.s32 %v452, %v394
        %v460 = vadd.s32 %v452, %v395
        %v461 = vadd.s32 %v452, %v396
        %v462 = vadd.s32 %v452, %v397
        %v463 = vadd.s32 %v452, %v398
        %v464 = vadd.s32 %v452, %v399
        %vm465 = vcmp.lt.s32.totalorder %v453, 0
        %v466 = vsub.s32 0, %v453
        %v467 = vsel %vm465, %v466, %v453
        %v468 = vshrl.u32 %v467, 7
        %v469 = vand.u32 %v467, 127
        %v470 = vsub.s32 0, %v469
        %v471 = vsel %vm465, %v470, %v469
        %vm472 = vcmp.lt.s32.totalorder %v454, 0
        %v473 = vsub.s32 0, %v454
        %v474 = vsel %vm472, %v473, %v454
        %v475 = vshrl.u32 %v474, 7
        %v476 = vand.u32 %v474, 127
        %v477 = vsub.s32 0, %v476
        %v478 = vsel %vm472, %v477, %v476
        %vm479 = vcmp.lt.s32.totalorder %v455, 0
        %v480 = vsub.s32 0, %v455
        %v481 = vsel %vm479, %v480, %v455
        %v482 = vshrl.u32 %v481, 7
        %v483 = vand.u32 %v481, 127
        %v484 = vsub.s32 0, %v483
        %v485 = vsel %vm479, %v484, %v483
        %vm486 = vcmp.lt.s32.totalorder %v456, 0
        %v487 = vsub.s32 0, %v456
        %v488 = vsel %vm486, %v487, %v456
        %v489 = vshrl.u32 %v488, 7
        %v490 = vand.u32 %v488, 127
        %v491 = vsub.s32 0, %v490
        %v492 = vsel %vm486, %v491, %v490
        %vm493 = vcmp.lt.s32.totalorder %v457, 0
        %v494 = vsub.s32 0, %v457
        %v495 = vsel %vm493, %v494, %v457
        %v496 = vshrl.u32 %v495, 7
        %v497 = vand.u32 %v495, 127
        %v498 = vsub.s32 0, %v497
        %v499 = vsel %vm493, %v498, %v497
        %vm500 = vcmp.lt.s32.totalorder %v458, 0
        %v501 = vsub.s32 0, %v458
        %v502 = vsel %vm500, %v501, %v458
        %v503 = vshrl.u32 %v502, 7
        %v504 = vand.u32 %v502, 127
        %v505 = vsub.s32 0, %v504
        %v506 = vsel %vm500, %v505, %v504
        %vm507 = vcmp.lt.s32.totalorder %v459, 0
        %v508 = vsub.s32 0, %v459
        %v509 = vsel %vm507, %v508, %v459
        %v510 = vshrl.u32 %v509, 7
        %v511 = vand.u32 %v509, 127
        %v512 = vsub.s32 0, %v511
        %v513 = vsel %vm507, %v512, %v511
        %vm514 = vcmp.lt.s32.totalorder %v460, 0
        %v515 = vsub.s32 0, %v460
        %v516 = vsel %vm514, %v515, %v460
        %v517 = vshrl.u32 %v516, 7
        %v518 = vand.u32 %v516, 127
        %v519 = vsub.s32 0, %v518
        %v520 = vsel %vm514, %v519, %v518
        %vm521 = vcmp.lt.s32.totalorder %v461, 0
        %v522 = vsub.s32 0, %v461
        %v523 = vsel %vm521, %v522, %v461
        %v524 = vshrl.u32 %v523, 7
        %v525 = vand.u32 %v523, 127
        %v526 = vsub.s32 0, %v525
        %v527 = vsel %vm521, %v526, %v525
        %vm528 = vcmp.lt.s32.totalorder %v462, 0
        %v529 = vsub.s32 0, %v462
        %v530 = vsel %vm528, %v529, %v462
        %v531 = vshrl.u32 %v530, 7
        %v532 = vand.u32 %v530, 127
        %v533 = vsub.s32 0, %v532
        %v534 = vsel %vm528, %v533, %v532
        %vm535 = vcmp.lt.s32.totalorder %v463, 0
        %v536 = vsub.s32 0, %v463
        %v537 = vsel %vm535, %v536, %v463
        %v538 = vshrl.u32 %v537, 7
        %v539 = vand.u32 %v537, 127
        %v540 = vsub.s32 0, %v539
        %v541 = vsel %vm535, %v540, %v539
        %vm542 = vcmp.lt.s32.totalorder %v464, 0
        %v543 = vsub.s32 0, %v464
        %v544 = vsel %vm542, %v543, %v464
        %v545 = vshrl.u32 %v544, 7
        %v546 = vand.u32 %v544, 127
        %v547 = vsub.s32 0, %v546
        %v548 = vsel %vm542, %v547, %v546
        %vm549 = vcmp.ne.s32.totalorder %v471, 0
        %vm550 = vcmp.ne.s32.totalorder %v478, 0
        %vm551 = vcmp.ne.s32.totalorder %v485, 0
        %vm552 = vcmp.ne.s32.totalorder %v492, 0
        %vm553 = vcmp.ne.s32.totalorder %v499, 0
        %vm554 = vcmp.ne.s32.totalorder %v506, 0
        %vm555 = vcmp.ne.s32.totalorder %v513, 0
        %vm556 = vcmp.ne.s32.totalorder %v520, 0
        %vm557 = vcmp.ne.s32.totalorder %v527, 0
        %vm558 = vcmp.ne.s32.totalorder %v534, 0
        %vm559 = vcmp.ne.s32.totalorder %v541, 0
        %vm560 = vcmp.ne.s32.totalorder %v548, 0
        %vm561 = vcmp.lt.s32.totalorder %v471, 0
        %vm562 = vcmp.lt.s32.totalorder %v478, 0
        %vm563 = vcmp.lt.s32.totalorder %v485, 0
        %vm564 = vcmp.lt.s32.totalorder %v492, 0
        %vm565 = vcmp.lt.s32.totalorder %v499, 0
        %vm566 = vcmp.lt.s32.totalorder %v506, 0
        %vm567 = vcmp.lt.s32.totalorder %v513, 0
        %vm568 = vcmp.lt.s32.totalorder %v520, 0
        %vm569 = vcmp.lt.s32.totalorder %v527, 0
        %vm570 = vcmp.lt.s32.totalorder %v534, 0
        %vm571 = vcmp.lt.s32.totalorder %v541, 0
        %vm572 = vcmp.lt.s32.totalorder %v548, 0
        %vm573 = vmand %vm561, %vm549
        %vm574 = vmand %vm562, %vm550
        %vm575 = vmand %vm563, %vm551
        %vm576 = vmand %vm564, %vm552
        %vm577 = vmand %vm565, %vm553
        %vm578 = vmand %vm566, %vm554
        %vm579 = vmand %vm567, %vm555
        %vm580 = vmand %vm568, %vm556
        %vm581 = vmand %vm569, %vm557
        %vm582 = vmand %vm570, %vm558
        %vm583 = vmand %vm571, %vm559
        %vm584 = vmand %vm572, %vm560
        %v585 = vadd.s32 %v471, 128
        %v586 = vadd.s32 %v478, 128
        %v587 = vadd.s32 %v485, 128
        %v588 = vadd.s32 %v492, 128
        %v589 = vadd.s32 %v499, 128
        %v590 = vadd.s32 %v506, 128
        %v591 = vadd.s32 %v513, 128
        %v592 = vadd.s32 %v520, 128
        %v593 = vadd.s32 %v527, 128
        %v594 = vadd.s32 %v534, 128
        %v595 = vadd.s32 %v541, 128
        %v596 = vadd.s32 %v548, 128
        %v597 = vsel %vm573, %v585, %v471
        %v598 = vsel %vm574, %v586, %v478
        %v599 = vsel %vm575, %v587, %v485
        %v600 = vsel %vm576, %v588, %v492
        %v601 = vsel %vm577, %v589, %v499
        %v602 = vsel %vm578, %v590, %v506
        %v603 = vsel %vm579, %v591, %v513
        %v604 = vsel %vm580, %v592, %v520
        %v605 = vsel %vm581, %v593, %v527
        %v606 = vsel %vm582, %v594, %v534
        %v607 = vsel %vm583, %v595, %v541
        %v608 = vsel %vm584, %v596, %v548
        %vm609 = vcmp.eq.s32.totalorder %v597, 0
        %vm610 = vcmp.eq.s32.totalorder %v598, 0
        %vm611 = vcmp.eq.s32.totalorder %v599, 0
        %vm612 = vcmp.eq.s32.totalorder %v600, 0
        %vm613 = vcmp.eq.s32.totalorder %v601, 0
        %vm614 = vcmp.eq.s32.totalorder %v602, 0
        %vm615 = vcmp.eq.s32.totalorder %v603, 0
        %vm616 = vcmp.eq.s32.totalorder %v604, 0
        %vm617 = vcmp.eq.s32.totalorder %v605, 0
        %vm618 = vcmp.eq.s32.totalorder %v606, 0
        %vm619 = vcmp.eq.s32.totalorder %v607, 0
        %vm620 = vcmp.eq.s32.totalorder %v608, 0
        %v621 = vsel %vm609, 1, 0
        %v622 = vsel %vm610, 1, 0
        %v623 = vsel %vm611, 1, 0
        %v624 = vsel %vm612, 1, 0
        %v625 = vsel %vm613, 1, 0
        %v626 = vsel %vm614, 1, 0
        %v627 = vsel %vm615, 1, 0
        %v628 = vsel %vm616, 1, 0
        %v629 = vsel %vm617, 1, 0
        %v630 = vsel %vm618, 1, 0
        %v631 = vsel %vm619, 1, 0
        %v632 = vsel %vm620, 1, 0
        %vm633 = vcmp.eq.s32.totalorder %v621, 1
        %vm634 = vcmp.eq.s32.totalorder %v622, 1
        %vm635 = vcmp.eq.s32.totalorder %v623, 1
        %vm636 = vcmp.eq.s32.totalorder %v624, 1
        %vm637 = vcmp.eq.s32.totalorder %v625, 1
        %vm638 = vcmp.eq.s32.totalorder %v626, 1
        %vm639 = vcmp.eq.s32.totalorder %v627, 1
        %vm640 = vcmp.eq.s32.totalorder %v628, 1
        %vm641 = vcmp.eq.s32.totalorder %v629, 1
        %vm642 = vcmp.eq.s32.totalorder %v630, 1
        %vm643 = vcmp.eq.s32.totalorder %v631, 1
        %vm644 = vcmp.eq.s32.totalorder %v632, 1
        %v645 = vsel %vm633, 0.0, %v439
        %v646 = vsel %vm634, 0.0, %v440
        %v647 = vsel %vm635, 0.0, %v441
        %v648 = vsel %vm636, 0.0, %v442
        %v649 = vsel %vm637, 0.0, %v443
        %v650 = vsel %vm638, 0.0, %v444
        %v651 = vsel %vm639, 0.0, %v445
        %v652 = vsel %vm640, 0.0, %v446
        %v653 = vsel %vm641, 0.0, %v447
        %v654 = vsel %vm642, 0.0, %v448
        %v655 = vsel %vm643, 0.0, %v449
        %v656 = vsel %vm644, 0.0, %v450
        %v657 = vld [vmem:[%s2] sm:$0x3]
        %v658 = vsub.f32 %v350, %v645
        %v659 = vsub.f32 %v351, %v646
        %v660 = vsub.f32 %v352, %v647
        %v661 = vsub.f32 %v353, %v648
        %v662 = vsub.f32 %v354, %v649
        %v663 = vsub.f32 %v355, %v650
        %v664 = vsub.f32 %v356, %v651
        %v665 = vsub.f32 %v357, %v652
        %v666 = vsub.f32 %v358, %v653
        %v667 = vsub.f32 %v359, %v654
        %v668 = vsub.f32 %v360, %v655
        %v669 = vsub.f32 %v361, %v656
        %v670 = vperm.slane %v657, 0
        %v671 = vmul.f32 %v670, %v658
        %v672 = vmul.f32 %v670, %v659
        %v673 = vmul.f32 %v670, %v660
        %v674 = vmul.f32 %v670, %v661
        %v675 = vmul.f32 %v670, %v662
        %v676 = vmul.f32 %v670, %v663
        %v677 = vmul.f32 %v670, %v664
        %v678 = vmul.f32 %v670, %v665
        %v679 = vmul.f32 %v670, %v666
        %v680 = vmul.f32 %v670, %v667
        %v681 = vmul.f32 %v670, %v668
        %v682 = vmul.f32 %v670, %v669
        %v683 = vadd.f32 %v645, %v671
        %v684 = vadd.f32 %v646, %v672
        %v685 = vadd.f32 %v647, %v673
        %v686 = vadd.f32 %v648, %v674
        %v687 = vadd.f32 %v649, %v675
        %v688 = vadd.f32 %v650, %v676
        %v689 = vadd.f32 %v651, %v677
        %v690 = vadd.f32 %v652, %v678
        %v691 = vadd.f32 %v653, %v679
        %v692 = vadd.f32 %v654, %v680
        %v693 = vadd.f32 %v655, %v681
        %v694 = vadd.f32 %v656, %v682
        %v695 = vperm.slane %v657, 1
        %v696 = vmul.f32 %v695, %v658
        %v697 = vmul.f32 %v695, %v659
        %v698 = vmul.f32 %v695, %v660
        %v699 = vmul.f32 %v695, %v661
        %v700 = vmul.f32 %v695, %v662
        %v701 = vmul.f32 %v695, %v663
        %v702 = vmul.f32 %v695, %v664
        %v703 = vmul.f32 %v695, %v665
        %v704 = vmul.f32 %v695, %v666
        %v705 = vmul.f32 %v695, %v667
        %v706 = vmul.f32 %v695, %v668
        %v707 = vmul.f32 %v695, %v669
        %v708 = vadd.f32 %v645, %v696
        %v709 = vadd.f32 %v646, %v697
        %v710 = vadd.f32 %v647, %v698
        %v711 = vadd.f32 %v648, %v699
        %v712 = vadd.f32 %v649, %v700
        %v713 = vadd.f32 %v650, %v701
        %v714 = vadd.f32 %v651, %v702
        %v715 = vadd.f32 %v652, %v703
        %v716 = vadd.f32 %v653, %v704
        %v717 = vadd.f32 %v654, %v705
        %v718 = vadd.f32 %v655, %v706
        %v719 = vadd.f32 %v656, %v707
        %v720 = vpack.c.bf16 %v709, %v708
        %v721 = vpack.c.bf16 %v711, %v710
        %v722 = vpack.c.bf16 %v713, %v712
        %v723 = vpack.c.bf16 %v715, %v714
        %v724 = vpack.c.bf16 %v717, %v716
        %v725 = vpack.c.bf16 %v719, %v718
        %v726 = vld [vmem:[#allocation7] sm:$0xf]
        %v727 = vld [vmem:[#allocation7 + $0x4] sm:$0xf]
        %v728 = vld [vmem:[#allocation7 + $0x8] sm:$0xf]
        %v729 = vld [vmem:[#allocation7 + $0xc] sm:$0xf]
        %v730 = vld [vmem:[#allocation7 + $0x10] sm:$0xf]
        %v731 = vld [vmem:[#allocation7 + $0x14] sm:$0xf]
        %v732 = vld [vmem:[#allocation7 + $0x18] sm:$0xf]
        %v733 = vld [vmem:[#allocation7 + $0x1c] sm:$0xf]
        %v734 = vld [vmem:[#allocation7 + $0x20] sm:$0xf]
        %v735 = vld [vmem:[#allocation7 + $0x24] sm:$0xf]
        %v736 = vld [vmem:[#allocation7 + $0x28] sm:$0xf]
        %v737 = vld [vmem:[#allocation7 + $0x2c] sm:$0xf]
        %v738 = vld [vmem:[#allocation7 + $0x30] sm:$0xf]
        %v739 = vld [vmem:[#allocation7 + $0x34] sm:$0xf]
        %v740 = vld [vmem:[#allocation7 + $0x38] sm:$0xf]
        %v741 = vld [vmem:[#allocation7 + $0x3c] sm:$0xf]
        %v758 = vunpack.c.l.b16 %v726
        %v759 = vunpack.c.l.b16 %v727
        %v760 = vunpack.c.l.b16 %v728
        %v761 = vunpack.c.l.b16 %v729
        %v762 = vunpack.c.l.b16 %v730
        %v763 = vunpack.c.l.b16 %v731
        %v764 = vunpack.c.l.b16 %v732
        %v765 = vunpack.c.l.b16 %v733
        %v766 = vunpack.c.l.b16 %v734
        %v767 = vunpack.c.l.b16 %v735
        %v768 = vunpack.c.l.b16 %v736
        %v769 = vunpack.c.l.b16 %v737
        %v770 = vunpack.c.l.b16 %v738
        %v771 = vunpack.c.l.b16 %v739
        %v772 = vunpack.c.l.b16 %v740
        %v773 = vunpack.c.l.b16 %v741
        %v774 = vpack.c.b16 %v759, %v758
        %v775 = vpack.c.b16 %v761, %v760
        %v776 = vpack.c.b16 %v763, %v762
        %v777 = vpack.c.b16 %v765, %v764
        %v778 = vpack.c.b16 %v767, %v766
        %v779 = vpack.c.b16 %v769, %v768
        %v780 = vpack.c.b16 %v771, %v770
        %v781 = vpack.c.b16 %v773, %v772
        %790 = vmatpush.bf16.msra.mxu0 %v781
        %791 = vmatpush.bf16.msra.mxu0 %v780
        %792 = vmatpush.bf16.msra.mxu0 %v779
        %793 = vmatpush.bf16.msra.mxu0 %v778
        %794 = vmatpush.bf16.msra.mxu0 %v777
        %795 = vmatpush.bf16.msra.mxu0 %v776
        %796 = vmatpush.bf16.msra.mxu0 %v775
        %797 = vmatpush.bf16.msra.mxu0 %v774
        %798 = vmatmul.bf16.gmra.mxu0 %v720
        %v799 = vpop.f32.mrf.mxu0
        %v800 = vadd.f32 0.0, %v799
        %v801 = vpop.f32.mrf.mxu0
        %v802 = vadd.f32 0.0, %v801
        %803 = vmatmul.bf16.gmra.mxu0 %v721
        %v804 = vpop.f32.mrf.mxu0
        %v805 = vadd.f32 0.0, %v804
        %v806 = vpop.f32.mrf.mxu0
        %v807 = vadd.f32 0.0, %v806
        %808 = vmatmul.bf16.gmra.mxu0 %v722
        %v809 = vpop.f32.mrf.mxu0
        %v810 = vadd.f32 0.0, %v809
        %v811 = vpop.f32.mrf.mxu0
        %v812 = vadd.f32 0.0, %v811
        %813 = vmatmul.bf16.gmra.mxu0 %v723
        %v814 = vpop.f32.mrf.mxu0
        %v815 = vadd.f32 0.0, %v814
        %v816 = vpop.f32.mrf.mxu0
        %v817 = vadd.f32 0.0, %v816
        %818 = vmatmul.bf16.gmra.mxu0 %v724
        %v819 = vpop.f32.mrf.mxu0
        %v820 = vadd.f32 0.0, %v819
        %v821 = vpop.f32.mrf.mxu0
        %v822 = vadd.f32 0.0, %v821
        %823 = vmatmul.bf16.gmra.mxu0 %v725
        %v824 = vpop.f32.mrf.mxu0
        %v825 = vadd.f32 0.0, %v824
        %v826 = vpop.f32.mrf.mxu0
        %v827 = vadd.f32 0.0, %v826
        %828 = vdwg.mxu0
        %v829 = vxor.u32 %v800, 2147483648
        %v830 = vxor.u32 %v802, 2147483648
        %v831 = vxor.u32 %v805, 2147483648
        %v832 = vxor.u32 %v807, 2147483648
        %v833 = vxor.u32 %v810, 2147483648
        %v834 = vxor.u32 %v812, 2147483648
        %v835 = vxor.u32 %v815, 2147483648
        %v836 = vxor.u32 %v817, 2147483648
        %v837 = vxor.u32 %v820, 2147483648
        %v838 = vxor.u32 %v822, 2147483648
        %v839 = vxor.u32 %v825, 2147483648
        %v840 = vxor.u32 %v827, 2147483648
        %v841 = vmul.f32 %v829, 1.442695
        %v842 = vpow.pop %v841
        %v843 = vmul.f32 %v830, 1.442695
        %v844 = vpow.pop %v843
        %v845 = vmul.f32 %v831, 1.442695
        %v846 = vpow.pop %v845
        %v847 = vmul.f32 %v832, 1.442695
        %v848 = vpow.pop %v847
        %v849 = vmul.f32 %v833, 1.442695
        %v850 = vpow.pop %v849
        %v851 = vmul.f32 %v834, 1.442695
        %v852 = vpow.pop %v851
        %v853 = vmul.f32 %v835, 1.442695
        %v854 = vpow.pop %v853
        %v855 = vmul.f32 %v836, 1.442695
        %v856 = vpow.pop %v855
        %v857 = vmul.f32 %v837, 1.442695
        %v858 = vpow.pop %v857
        %v859 = vmul.f32 %v838, 1.442695
        %v860 = vpow.pop %v859
        %v861 = vmul.f32 %v839, 1.442695
        %v862 = vpow.pop %v861
        %v863 = vmul.f32 %v840, 1.442695
        %v864 = vpow.pop %v863
        %v865 = vadd.f32 %v842, 1.0
        %v866 = vadd.f32 %v844, 1.0
        %v867 = vadd.f32 %v846, 1.0
        %v868 = vadd.f32 %v848, 1.0
        %v869 = vadd.f32 %v850, 1.0
        %v870 = vadd.f32 %v852, 1.0
        %v871 = vadd.f32 %v854, 1.0
        %v872 = vadd.f32 %v856, 1.0
        %v873 = vadd.f32 %v858, 1.0
        %v874 = vadd.f32 %v860, 1.0
        %v875 = vadd.f32 %v862, 1.0
        %v876 = vadd.f32 %v864, 1.0
        %v877 = vrcp.pop %v865
        %v878 = vmul.f32 %v865, %v877
        %v879 = vsub.f32 1.0, %v878
        %v880 = vmul.f32 %v877, %v879
        %v881 = vadd.f32 %v877, %v880
        %vm882 = vweird.f32 %v865
        %vm883 = vweird.f32 %v877
        %vm884 = vmor %vm882, %vm883
        %v885 = vsel %vm884, %v877, %v881
        %v886 = vand.u32 2147483647, %v865
        %vm887 = vcmp.eq.f32.partialorder %v886, 8.507059e+37
        %v888 = vand.u32 %v865, 2147483648
        %v889 = vor.u32 1.1754944e-38, %v888
        %v890 = vsel %vm887, %v889, %v885
        %v891 = vmul.f32 1.0, %v890
        %v892 = vrcp.pop %v866
        %v893 = vmul.f32 %v866, %v892
        %v894 = vsub.f32 1.0, %v893
        %v895 = vmul.f32 %v892, %v894
        %v896 = vadd.f32 %v892, %v895
        %vm897 = vweird.f32 %v866
        %vm898 = vweird.f32 %v892
        %vm899 = vmor %vm897, %vm898
        %v900 = vsel %vm899, %v892, %v896
        %v901 = vand.u32 2147483647, %v866
        %vm902 = vcmp.eq.f32.partialorder %v901, 8.507059e+37
        %v903 = vand.u32 %v866, 2147483648
        %v904 = vor.u32 1.1754944e-38, %v903
        %v905 = vsel %vm902, %v904, %v900
        %v906 = vmul.f32 1.0, %v905
        %v907 = vrcp.pop %v867
        %v908 = vmul.f32 %v867, %v907
        %v909 = vsub.f32 1.0, %v908
        %v910 = vmul.f32 %v907, %v909
        %v911 = vadd.f32 %v907, %v910
        %vm912 = vweird.f32 %v867
        %vm913 = vweird.f32 %v907
        %vm914 = vmor %vm912, %vm913
        %v915 = vsel %vm914, %v907, %v911
        %v916 = vand.u32 2147483647, %v867
        %vm917 = vcmp.eq.f32.partialorder %v916, 8.507059e+37
        %v918 = vand.u32 %v867, 2147483648
        %v919 = vor.u32 1.1754944e-38, %v918
        %v920 = vsel %vm917, %v919, %v915
        %v921 = vmul.f32 1.0, %v920
        %v922 = vrcp.pop %v868
        %v923 = vmul.f32 %v868, %v922
        %v924 = vsub.f32 1.0, %v923
        %v925 = vmul.f32 %v922, %v924
        %v926 = vadd.f32 %v922, %v925
        %vm927 = vweird.f32 %v868
        %vm928 = vweird.f32 %v922
        %vm929 = vmor %vm927, %vm928
        %v930 = vsel %vm929, %v922, %v926
        %v931 = vand.u32 2147483647, %v868
        %vm932 = vcmp.eq.f32.partialorder %v931, 8.507059e+37
        %v933 = vand.u32 %v868, 2147483648
        %v934 = vor.u32 1.1754944e-38, %v933
        %v935 = vsel %vm932, %v934, %v930
        %v936 = vmul.f32 1.0, %v935
        %v937 = vrcp.pop %v869
        %v938 = vmul.f32 %v869, %v937
        %v939 = vsub.f32 1.0, %v938
        %v940 = vmul.f32 %v937, %v939
        %v941 = vadd.f32 %v937, %v940
        %vm942 = vweird.f32 %v869
        %vm943 = vweird.f32 %v937
        %vm944 = vmor %vm942, %vm943
        %v945 = vsel %vm944, %v937, %v941
        %v946 = vand.u32 2147483647, %v869
        %vm947 = vcmp.eq.f32.partialorder %v946, 8.507059e+37
        %v948 = vand.u32 %v869, 2147483648
        %v949 = vor.u32 1.1754944e-38, %v948
        %v950 = vsel %vm947, %v949, %v945
        %v951 = vmul.f32 1.0, %v950
        %v952 = vrcp.pop %v870
        %v953 = vmul.f32 %v870, %v952
        %v954 = vsub.f32 1.0, %v953
        %v955 = vmul.f32 %v952, %v954
        %v956 = vadd.f32 %v952, %v955
        %vm957 = vweird.f32 %v870
        %vm958 = vweird.f32 %v952
        %vm959 = vmor %vm957, %vm958
        %v960 = vsel %vm959, %v952, %v956
        %v961 = vand.u32 2147483647, %v870
        %vm962 = vcmp.eq.f32.partialorder %v961, 8.507059e+37
        %v963 = vand.u32 %v870, 2147483648
        %v964 = vor.u32 1.1754944e-38, %v963
        %v965 = vsel %vm962, %v964, %v960
        %v966 = vmul.f32 1.0, %v965
        %v967 = vrcp.pop %v871
        %v968 = vmul.f32 %v871, %v967
        %v969 = vsub.f32 1.0, %v968
        %v970 = vmul.f32 %v967, %v969
        %v971 = vadd.f32 %v967, %v970
        %vm972 = vweird.f32 %v871
        %vm973 = vweird.f32 %v967
        %vm974 = vmor %vm972, %vm973
        %v975 = vsel %vm974, %v967, %v971
        %v976 = vand.u32 2147483647, %v871
        %vm977 = vcmp.eq.f32.partialorder %v976, 8.507059e+37
        %v978 = vand.u32 %v871, 2147483648
        %v979 = vor.u32 1.1754944e-38, %v978
        %v980 = vsel %vm977, %v979, %v975
        %v981 = vmul.f32 1.0, %v980
        %v982 = vrcp.pop %v872
        %v983 = vmul.f32 %v872, %v982
        %v984 = vsub.f32 1.0, %v983
        %v985 = vmul.f32 %v982, %v984
        %v986 = vadd.f32 %v982, %v985
        %vm987 = vweird.f32 %v872
        %vm988 = vweird.f32 %v982
        %vm989 = vmor %vm987, %vm988
        %v990 = vsel %vm989, %v982, %v986
        %v991 = vand.u32 2147483647, %v872
        %vm992 = vcmp.eq.f32.partialorder %v991, 8.507059e+37
        %v993 = vand.u32 %v872, 2147483648
        %v994 = vor.u32 1.1754944e-38, %v993
        %v995 = vsel %vm992, %v994, %v990
        %v996 = vmul.f32 1.0, %v995
        %v997 = vrcp.pop %v873
        %v998 = vmul.f32 %v873, %v997
        %v999 = vsub.f32 1.0, %v998
        %v1000 = vmul.f32 %v997, %v999
        %v1001 = vadd.f32 %v997, %v1000
        %vm1002 = vweird.f32 %v873
        %vm1003 = vweird.f32 %v997
        %vm1004 = vmor %vm1002, %vm1003
        %v1005 = vsel %vm1004, %v997, %v1001
        %v1006 = vand.u32 2147483647, %v873
        %vm1007 = vcmp.eq.f32.partialorder %v1006, 8.507059e+37
        %v1008 = vand.u32 %v873, 2147483648
        %v1009 = vor.u32 1.1754944e-38, %v1008
        %v1010 = vsel %vm1007, %v1009, %v1005
        %v1011 = vmul.f32 1.0, %v1010
        %v1012 = vrcp.pop %v874
        %v1013 = vmul.f32 %v874, %v1012
        %v1014 = vsub.f32 1.0, %v1013
        %v1015 = vmul.f32 %v1012, %v1014
        %v1016 = vadd.f32 %v1012, %v1015
        %vm1017 = vweird.f32 %v874
        %vm1018 = vweird.f32 %v1012
        %vm1019 = vmor %vm1017, %vm1018
        %v1020 = vsel %vm1019, %v1012, %v1016
        %v1021 = vand.u32 2147483647, %v874
        %vm1022 = vcmp.eq.f32.partialorder %v1021, 8.507059e+37
        %v1023 = vand.u32 %v874, 2147483648
        %v1024 = vor.u32 1.1754944e-38, %v1023
        %v1025 = vsel %vm1022, %v1024, %v1020
        %v1026 = vmul.f32 1.0, %v1025
        %v1027 = vrcp.pop %v875
        %v1028 = vmul.f32 %v875, %v1027
        %v1029 = vsub.f32 1.0, %v1028
        %v1030 = vmul.f32 %v1027, %v1029
        %v1031 = vadd.f32 %v1027, %v1030
        %vm1032 = vweird.f32 %v875
        %vm1033 = vweird.f32 %v1027
        %vm1034 = vmor %vm1032, %vm1033
        %v1035 = vsel %vm1034, %v1027, %v1031
        %v1036 = vand.u32 2147483647, %v875
        %vm1037 = vcmp.eq.f32.partialorder %v1036, 8.507059e+37
        %v1038 = vand.u32 %v875, 2147483648
        %v1039 = vor.u32 1.1754944e-38, %v1038
        %v1040 = vsel %vm1037, %v1039, %v1035
        %v1041 = vmul.f32 1.0, %v1040
        %v1042 = vrcp.pop %v876
        %v1043 = vmul.f32 %v876, %v1042
        %v1044 = vsub.f32 1.0, %v1043
        %v1045 = vmul.f32 %v1042, %v1044
        %v1046 = vadd.f32 %v1042, %v1045
        %vm1047 = vweird.f32 %v876
        %vm1048 = vweird.f32 %v1042
        %vm1049 = vmor %vm1047, %vm1048
        %v1050 = vsel %vm1049, %v1042, %v1046
        %v1051 = vand.u32 2147483647, %v876
        %vm1052 = vcmp.eq.f32.partialorder %v1051, 8.507059e+37
        %v1053 = vand.u32 %v876, 2147483648
        %v1054 = vor.u32 1.1754944e-38, %v1053
        %v1055 = vsel %vm1052, %v1054, %v1050
        %v1056 = vmul.f32 1.0, %v1055
        %v1057 = vpack.c.bf16 %v684, %v683
        %v1058 = vpack.c.bf16 %v686, %v685
        %v1059 = vpack.c.bf16 %v688, %v687
        %v1060 = vpack.c.bf16 %v690, %v689
        %v1061 = vpack.c.bf16 %v692, %v691
        %v1062 = vpack.c.bf16 %v694, %v693
        %v1063 = vld [vmem:[#allocation5] sm:$0xf]
        %v1064 = vld [vmem:[#allocation5 + $0x4] sm:$0xf]
        %v1065 = vld [vmem:[#allocation5 + $0x8] sm:$0xf]
        %v1066 = vld [vmem:[#allocation5 + $0xc] sm:$0xf]
        %v1067 = vld [vmem:[#allocation5 + $0x10] sm:$0xf]
        %v1068 = vld [vmem:[#allocation5 + $0x14] sm:$0xf]
        %v1069 = vld [vmem:[#allocation5 + $0x18] sm:$0xf]
        %v1070 = vld [vmem:[#allocation5 + $0x1c] sm:$0xf]
        %v1071 = vld [vmem:[#allocation5 + $0x20] sm:$0xf]
        %v1072 = vld [vmem:[#allocation5 + $0x24] sm:$0xf]
        %v1073 = vld [vmem:[#allocation5 + $0x28] sm:$0xf]
        %v1074 = vld [vmem:[#allocation5 + $0x2c] sm:$0xf]
        %v1075 = vld [vmem:[#allocation5 + $0x30] sm:$0xf]
        %v1076 = vld [vmem:[#allocation5 + $0x34] sm:$0xf]
        %v1077 = vld [vmem:[#allocation5 + $0x38] sm:$0xf]
        %v1078 = vld [vmem:[#allocation5 + $0x3c] sm:$0xf]
        %v1095 = vunpack.c.l.b16 %v1063
        %v1096 = vunpack.c.l.b16 %v1064
        %v1097 = vunpack.c.l.b16 %v1065
        %v1098 = vunpack.c.l.b16 %v1066
        %v1099 = vunpack.c.l.b16 %v1067
        %v1100 = vunpack.c.l.b16 %v1068
        %v1101 = vunpack.c.l.b16 %v1069
        %v1102 = vunpack.c.l.b16 %v1070
        %v1103 = vunpack.c.l.b16 %v1071
        %v1104 = vunpack.c.l.b16 %v1072
        %v1105 = vunpack.c.l.b16 %v1073
        %v1106 = vunpack.c.l.b16 %v1074
        %v1107 = vunpack.c.l.b16 %v1075
        %v1108 = vunpack.c.l.b16 %v1076
        %v1109 = vunpack.c.l.b16 %v1077
        %v1110 = vunpack.c.l.b16 %v1078
        %v1111 = vpack.c.b16 %v1096, %v1095
        %v1112 = vpack.c.b16 %v1098, %v1097
        %v1113 = vpack.c.b16 %v1100, %v1099
        %v1114 = vpack.c.b16 %v1102, %v1101
        %v1115 = vpack.c.b16 %v1104, %v1103
        %v1116 = vpack.c.b16 %v1106, %v1105
        %v1117 = vpack.c.b16 %v1108, %v1107
        %v1118 = vpack.c.b16 %v1110, %v1109
        %1127 = vmatpush.bf16.msra.mxu0 %v1118
        %1128 = vmatpush.bf16.msra.mxu0 %v1117
        %1129 = vmatpush.bf16.msra.mxu0 %v1116
        %1130 = vmatpush.bf16.msra.mxu0 %v1115
        %1131 = vmatpush.bf16.msra.mxu0 %v1114
        %1132 = vmatpush.bf16.msra.mxu0 %v1113
        %1133 = vmatpush.bf16.msra.mxu0 %v1112
        %1134 = vmatpush.bf16.msra.mxu0 %v1111
        %1135 = vmatmul.bf16.gmra.mxu0 %v1057
        %v1136 = vpop.f32.mrf.mxu0
        %v1137 = vadd.f32 0.0, %v1136
        %v1138 = vpop.f32.mrf.mxu0
        %v1139 = vadd.f32 0.0, %v1138
        %1140 = vmatmul.bf16.gmra.mxu0 %v1058
        %v1141 = vpop.f32.mrf.mxu0
        %v1142 = vadd.f32 0.0, %v1141
        %v1143 = vpop.f32.mrf.mxu0
        %v1144 = vadd.f32 0.0, %v1143
        %1145 = vmatmul.bf16.gmra.mxu0 %v1059
        %v1146 = vpop.f32.mrf.mxu0
        %v1147 = vadd.f32 0.0, %v1146
        %v1148 = vpop.f32.mrf.mxu0
        %v1149 = vadd.f32 0.0, %v1148
        %1150 = vmatmul.bf16.gmra.mxu0 %v1060
        %v1151 = vpop.f32.mrf.mxu0
        %v1152 = vadd.f32 0.0, %v1151
        %v1153 = vpop.f32.mrf.mxu0
        %v1154 = vadd.f32 0.0, %v1153
        %1155 = vmatmul.bf16.gmra.mxu0 %v1061
        %v1156 = vpop.f32.mrf.mxu0
        %v1157 = vadd.f32 0.0, %v1156
        %v1158 = vpop.f32.mrf.mxu0
        %v1159 = vadd.f32 0.0, %v1158
        %1160 = vmatmul.bf16.gmra.mxu0 %v1062
        %v1161 = vpop.f32.mrf.mxu0
        %v1162 = vadd.f32 0.0, %v1161
        %v1163 = vpop.f32.mrf.mxu0
        %v1164 = vadd.f32 0.0, %v1163
        %1165 = vdwg.mxu0
        %v1166 = vmax.f32 %v1137, 0.0
        %v1167 = vmax.f32 %v1139, 0.0
        %v1168 = vmax.f32 %v1142, 0.0
        %v1169 = vmax.f32 %v1144, 0.0
        %v1170 = vmax.f32 %v1147, 0.0
        %v1171 = vmax.f32 %v1149, 0.0
        %v1172 = vmax.f32 %v1152, 0.0
        %v1173 = vmax.f32 %v1154, 0.0
        %v1174 = vmax.f32 %v1157, 0.0
        %v1175 = vmax.f32 %v1159, 0.0
        %v1176 = vmax.f32 %v1162, 0.0
        %v1177 = vmax.f32 %v1164, 0.0
        %v1178 = vmul.f32 %v1166, %v1166
        %v1179 = vmul.f32 %v1167, %v1167
        %v1180 = vmul.f32 %v1168, %v1168
        %v1181 = vmul.f32 %v1169, %v1169
        %v1182 = vmul.f32 %v1170, %v1170
        %v1183 = vmul.f32 %v1171, %v1171
        %v1184 = vmul.f32 %v1172, %v1172
        %v1185 = vmul.f32 %v1173, %v1173
        %v1186 = vmul.f32 %v1174, %v1174
        %v1187 = vmul.f32 %v1175, %v1175
        %v1188 = vmul.f32 %v1176, %v1176
        %v1189 = vmul.f32 %v1177, %v1177
        %v1190 = vpack.c.bf16 %v1179, %v1178
        %v1191 = vpack.c.bf16 %v1181, %v1180
        %v1192 = vpack.c.bf16 %v1183, %v1182
        %v1193 = vpack.c.bf16 %v1185, %v1184
        %v1194 = vpack.c.bf16 %v1187, %v1186
        %v1195 = vpack.c.bf16 %v1189, %v1188
        %v1196 = vld [vmem:[#allocation8] sm:$0xf]
        %v1197 = vld [vmem:[#allocation8 + $0x4] sm:$0xf]
        %v1198 = vld [vmem:[#allocation8 + $0x8] sm:$0xf]
        %v1199 = vld [vmem:[#allocation8 + $0xc] sm:$0xf]
        %v1200 = vld [vmem:[#allocation8 + $0x10] sm:$0xf]
        %v1201 = vld [vmem:[#allocation8 + $0x14] sm:$0xf]
        %v1202 = vld [vmem:[#allocation8 + $0x18] sm:$0xf]
        %v1203 = vld [vmem:[#allocation8 + $0x1c] sm:$0xf]
        %v1204 = vld [vmem:[#allocation8 + $0x20] sm:$0xf]
        %v1205 = vld [vmem:[#allocation8 + $0x24] sm:$0xf]
        %v1206 = vld [vmem:[#allocation8 + $0x28] sm:$0xf]
        %v1207 = vld [vmem:[#allocation8 + $0x2c] sm:$0xf]
        %v1208 = vld [vmem:[#allocation8 + $0x30] sm:$0xf]
        %v1209 = vld [vmem:[#allocation8 + $0x34] sm:$0xf]
        %v1210 = vld [vmem:[#allocation8 + $0x38] sm:$0xf]
        %v1211 = vld [vmem:[#allocation8 + $0x3c] sm:$0xf]
        %v1228 = vunpack.c.l.b16 %v1196
        %v1229 = vunpack.c.l.b16 %v1197
        %v1230 = vunpack.c.l.b16 %v1198
        %v1231 = vunpack.c.l.b16 %v1199
        %v1232 = vunpack.c.l.b16 %v1200
        %v1233 = vunpack.c.l.b16 %v1201
        %v1234 = vunpack.c.l.b16 %v1202
        %v1235 = vunpack.c.l.b16 %v1203
        %v1236 = vunpack.c.l.b16 %v1204
        %v1237 = vunpack.c.l.b16 %v1205
        %v1238 = vunpack.c.l.b16 %v1206
        %v1239 = vunpack.c.l.b16 %v1207
        %v1240 = vunpack.c.l.b16 %v1208
        %v1241 = vunpack.c.l.b16 %v1209
        %v1242 = vunpack.c.l.b16 %v1210
        %v1243 = vunpack.c.l.b16 %v1211
        %v1244 = vpack.c.b16 %v1229, %v1228
        %v1245 = vpack.c.b16 %v1231, %v1230
        %v1246 = vpack.c.b16 %v1233, %v1232
        %v1247 = vpack.c.b16 %v1235, %v1234
        %v1248 = vpack.c.b16 %v1237, %v1236
        %v1249 = vpack.c.b16 %v1239, %v1238
        %v1250 = vpack.c.b16 %v1241, %v1240
        %v1251 = vpack.c.b16 %v1243, %v1242
        %1260 = vmatpush.bf16.msra.mxu0 %v1251
        %1261 = vmatpush.bf16.msra.mxu0 %v1250
        %1262 = vmatpush.bf16.msra.mxu0 %v1249
        %1263 = vmatpush.bf16.msra.mxu0 %v1248
        %1264 = vmatpush.bf16.msra.mxu0 %v1247
        %1265 = vmatpush.bf16.msra.mxu0 %v1246
        %1266 = vmatpush.bf16.msra.mxu0 %v1245
        %1267 = vmatpush.bf16.msra.mxu0 %v1244
        %1268 = vmatmul.bf16.gmra.mxu0 %v1190
        %v1269 = vpop.f32.mrf.mxu0
        %v1270 = vadd.f32 0.0, %v1269
        %v1271 = vpop.f32.mrf.mxu0
        %v1272 = vadd.f32 0.0, %v1271
        %1273 = vmatmul.bf16.gmra.mxu0 %v1191
        %v1274 = vpop.f32.mrf.mxu0
        %v1275 = vadd.f32 0.0, %v1274
        %v1276 = vpop.f32.mrf.mxu0
        %v1277 = vadd.f32 0.0, %v1276
        %1278 = vmatmul.bf16.gmra.mxu0 %v1192
        %v1279 = vpop.f32.mrf.mxu0
        %v1280 = vadd.f32 0.0, %v1279
        %v1281 = vpop.f32.mrf.mxu0
        %v1282 = vadd.f32 0.0, %v1281
        %1283 = vmatmul.bf16.gmra.mxu0 %v1193
        %v1284 = vpop.f32.mrf.mxu0
        %v1285 = vadd.f32 0.0, %v1284
        %v1286 = vpop.f32.mrf.mxu0
        %v1287 = vadd.f32 0.0, %v1286
        %1288 = vmatmul.bf16.gmra.mxu0 %v1194
        %v1289 = vpop.f32.mrf.mxu0
        %v1290 = vadd.f32 0.0, %v1289
        %v1291 = vpop.f32.mrf.mxu0
        %v1292 = vadd.f32 0.0, %v1291
        %1293 = vmatmul.bf16.gmra.mxu0 %v1195
        %v1294 = vpop.f32.mrf.mxu0
        %v1295 = vadd.f32 0.0, %v1294
        %v1296 = vpop.f32.mrf.mxu0
        %v1297 = vadd.f32 0.0, %v1296
        %1298 = vdwg.mxu0
        %v1299 = vmul.f32 %v891, %v1270
        %v1300 = vmul.f32 %v906, %v1272
        %v1301 = vmul.f32 %v921, %v1275
        %v1302 = vmul.f32 %v936, %v1277
        %v1303 = vmul.f32 %v951, %v1280
        %v1304 = vmul.f32 %v966, %v1282
        %v1305 = vmul.f32 %v981, %v1285
        %v1306 = vmul.f32 %v996, %v1287
        %v1307 = vmul.f32 %v1011, %v1290
        %v1308 = vmul.f32 %v1026, %v1292
        %v1309 = vmul.f32 %v1041, %v1295
        %v1310 = vmul.f32 %v1056, %v1297
        %1311 = vst [vmem:[%s332] sm:$0xff] %v1299
        %1312 = vst [vmem:[%s332 + $0x8] sm:$0xff] %v1300
        %1313 = vst [vmem:[%s332 + $0x10] sm:$0xff] %v1301
        %1314 = vst [vmem:[%s332 + $0x18] sm:$0xff] %v1302
        %1315 = vst [vmem:[%s332 + $0x20] sm:$0xff] %v1303
        %1316 = vst [vmem:[%s332 + $0x28] sm:$0xff] %v1304
        %1317 = vst [vmem:[%s332 + $0x30] sm:$0xff] %v1305
        %1318 = vst [vmem:[%s332 + $0x38] sm:$0xff] %v1306
        %1319 = vst [vmem:[%s332 + $0x40] sm:$0xff] %v1307
        %1320 = vst [vmem:[%s332 + $0x48] sm:$0xff] %v1308
        %1321 = vst [vmem:[%s332 + $0x50] sm:$0xff] %v1309
        %1322 = vst [vmem:[%s332 + $0x58] sm:$0xff] %v1310
        %s1323 = sand.u32 %s169, 1
        %s1324 = scalar_lea.sflag [#allocation4], %s1323
        %s1325 = sand.u32 %s169, 1
        %s1326 = smul.addr %s1325, 96
        %s1327 = scalar_lea.vmem [#allocation10], %s1326
        // Predicated region
        $region61: #{tpu_custom_call.1} parent=43 // pred_check
          %p1328 = pneg %p179
        $region62: #{tpu_custom_call.1} parent=43 // pred_check_branch
          %1330 = sbr.rel (%p1328) target = $region64
        $region63: #{tpu_custom_call.1} parent=43 // pred_region
          %s1331 = smul.u32 12, %s25
          %1333 = vsyncadd %s1324, 0
          %s1334 = smul.addr %s1331, 8
          %s1335 = scalar_lea.hbm %s6, %s1334
          %s1336 = sshll.u32 %s1327, 4
          %s1337 = int_to_ptr.vmem [resolvable:$true] %s1336
          %s1338 = sshll.u32 %s1335, 4
          %s1339 = int_to_ptr.hbm [resolvable:$true] %s1338
          %1344 = dma.vmem_to_hbm [thread:$0]  %s1337, 1536, %s1339, %s1324, 128, 128, 8
        $region64: #{tpu_custom_call.1} parent=43 // pred_fallthru
          _
      $region44: #{tpu_custom_call.1} parent=5 // pred_fallthru
        _
      %p1345 = scmp.le.s32.totalorder 2, %s20
      // Predicated region
      $region65: #{tpu_custom_call.1} parent=5 // pred_check
        %p1346 = pneg %p1345
      $region66: #{tpu_custom_call.1} parent=5 // pred_check_branch
        %1348 = sbr.rel (%p1346) target = $region68
      $region67: #{tpu_custom_call.1} parent=5 // pred_region
        %s1349 = ssub.s32 %s20, 2
        // Predicated region
        $region69: #{tpu_custom_call.1} parent=67 // pred_check
          %p1350 = pneg %p185
        $region70: #{tpu_custom_call.1} parent=67 // pred_check_branch
          %1352 = sbr.rel (%p1350) target = $region72
        $region71: #{tpu_custom_call.1} parent=67 // pred_region
          %s1353 = sand.u32 %s170, 1
          %s1354 = scalar_lea.sflag [#allocation4], %s1353
          %s1355 = sand.u32 %s170, 1
          %s1356 = smul.addr %s1355, 96
          %s1357 = scalar_lea.vmem [#allocation10], %s1356
          %1359 = dma.done %s1354, 1536
        $region72: #{tpu_custom_call.1} parent=67 // pred_fallthru
          _
      $region68: #{tpu_custom_call.1} parent=5 // pred_fallthru
        _
    $region6: #{tpu_custom_call.1} parent=1 // loop_footer
      %s24 = sadd.s32 1, %s20
    $region7: #{tpu_custom_call.1} parent=1 // loop_footer_branch
      %19 = sbr.rel target = $region3
    $region8: #{tpu_custom_call.1} parent=1 // loop_exit
      _
    %1360 = vsyncpa [#allocation3], 1
    %s1361 = scalar_lea.sflag [#allocation3], 1
    %1362 = vsyncpa %s1361, 1
    %1363 = vsyncpa [#allocation6], 1
    %1364 = vsyncpa [#allocation9], 1
    %1365 = vsyncpa [#allocation4], 1
    %s1366 = scalar_lea.sflag [#allocation4], 1
    %1367 = vsyncpa %s1366, 1

</llo_original>
